<compile_context>
chip_gen: v7x
topology: tpu7x:2x2x1
jax: 0.10.0
libtpu: 0.0.40
codegen_flags: <defaults>
</compile_context>

<pallas_src>
import functools

import jax
import jax.numpy as jnp
from jax import lax
from jax.experimental import pallas as pl
from jax.experimental.pallas import tpu as pltpu


def _layer_norm(x, gamma, beta, eps=1e-5):
    """LayerNorm over the last axis (PyTorch nn.LayerNorm semantics, eps=1e-5)."""
    mu = jnp.mean(x, axis=-1, keepdims=True)
    xc = x - mu
    var = jnp.mean(xc * xc, axis=-1, keepdims=True)
    return xc * lax.rsqrt(var + eps) * gamma + beta


def _encoder_layer_kernel(src_ref, gpre_ref, bpre_ref, wqkv_ref, wproj_ref,
                          bproj_ref, g1_ref, b1_ref, w1_ref, bb1_ref,
                          w2_ref, bb2_ref, o_ref, *, num_heads):
    bb, n, c = src_ref.shape
    dh = c // num_heads
    cd = wqkv_ref.dtype                                    # MXU operand dtype (bf16)

    src2 = src_ref[...].astype(jnp.float32).reshape(bb * n, c)

    # --- pre-norm (f32) ---
    xn2 = _layer_norm(src2, gpre_ref[...], bpre_ref[...])

    # --- fused QKV: one wide (bb*n, C) x (C, 3C) MXU dot; attn scale folded in Wq ---
    qkv2 = jnp.dot(xn2.astype(cd), wqkv_ref[...],
                   preferred_element_type=jnp.float32)     # (bb*n, 3C)
    q = qkv2[:, 0 * c:1 * c].reshape(bb, n, c)
    k = qkv2[:, 1 * c:2 * c].reshape(bb, n, c)
    v = qkv2[:, 2 * c:3 * c].reshape(bb, n, c)

    # --- per-head softmax(QK^T)V ; heads are static lane slices of width dh ---
    # TODO(synk): for large head counts switch to lax.fori_loop to bound live ranges.
    head_out = []
    for h in range(num_heads):
        qh = q[:, :, h * dh:(h + 1) * dh].astype(cd)
        kh = k[:, :, h * dh:(h + 1) * dh].astype(cd)
        vh = v[:, :, h * dh:(h + 1) * dh].astype(cd)
        s = jnp.einsum("bnd,bmd->bnm", qh, kh,
                       preferred_element_type=jnp.float32)
        s = s - jnp.max(s, axis=-1, keepdims=True)
        p = jnp.exp(s)
        p = p * pl.reciprocal(jnp.sum(p, axis=-1, keepdims=True), approx=True)
        head_out.append(jnp.einsum("bnm,bmd->bnd", p.astype(cd), vh,
                                   preferred_element_type=jnp.float32))
    attn = jnp.concatenate(head_out, axis=-1)              # (bb, n, c), head-major lanes

    # --- wide output projection + bias ---
    attn2 = jnp.dot(attn.reshape(bb * n, c).astype(cd), wproj_ref[...],
                    preferred_element_type=jnp.float32) + bproj_ref[...]

    # --- residual + norm1 ---
    y2 = _layer_norm(src2 + attn2, g1_ref[...], b1_ref[...])

    # --- feed-forward (Linear1 -> relu -> Linear2) + residual ---
    h1 = jnp.dot(y2.astype(cd), w1_ref[...],
                 preferred_element_type=jnp.float32) + bb1_ref[...]
    h1 = jnp.maximum(h1, 0.0)
    ff2 = jnp.dot(h1.astype(cd), w2_ref[...],
                  preferred_element_type=jnp.float32) + bb2_ref[...]

    o_ref[...] = (y2 + ff2).reshape(bb, n, c).astype(o_ref.dtype)


def prepare_params(params, num_heads, compute_dtype=jnp.bfloat16):
    """One-time weight relayout / cast (hoisted out of the per-call forward path)."""
    C = params["g_pre"].shape[0]
    F_ = params["w1"].shape[0]
    assert C % num_heads == 0, "d_model must be divisible by num_heads"
    dh = C // num_heads
    scale = float(dh) ** -0.5
    f32 = jnp.float32

    w_qkv = params["w_qkv"].astype(f32)                    # (3C, C) torch (out, in)
    # Columns ordered [q(all heads) | k | v]; fold the attention scale into Wq.
    wqkv = jnp.concatenate(
        [w_qkv[0 * C:1 * C].T * scale,
         w_qkv[1 * C:2 * C].T,
         w_qkv[2 * C:3 * C].T], axis=1)                    # (C, 3C)

    return {
        "g_pre": params["g_pre"].astype(f32).reshape(1, C),
        "b_pre": params["b_pre"].astype(f32).reshape(1, C),
        "wqkv": wqkv.astype(compute_dtype),                               # (C, 3C)
        "wproj": params["w_proj"].astype(f32).T.astype(compute_dtype),    # (C, C)
        "b_proj": params["b_proj"].astype(f32).reshape(1, C),
        "g1": params["g1"].astype(f32).reshape(1, C),
        "b1": params["b1"].astype(f32).reshape(1, C),
        "w1": params["w1"].astype(f32).T.astype(compute_dtype),           # (C, F)
        "b1_lin": params["b1_lin"].astype(f32).reshape(1, F_),
        "w2": params["w2"].astype(f32).T.astype(compute_dtype),           # (F, C)
        "b2_lin": params["b2_lin"].astype(f32).reshape(1, C),
    }


def _resident_weight_spec(shape):
    """Constant-index weight block: single-buffered (double-buffering a block whose
    index never changes is pure VMEM waste — matters most on v7x's 64 MiB VMEM)."""
    idx = lambda i: (0,) * len(shape)
    if hasattr(pl, "Buffered"):
        try:
            return pl.BlockSpec(shape, idx, pipeline_mode=pl.Buffered(1))
        except TypeError:
            pass
    return pl.BlockSpec(shape, idx)


def transformer_encoder_layer_forward(src, prepared, num_heads, *,
                                      block_b=None, vmem_limit_bytes=None):
    """src: (B, N, C). prepared: output of prepare_params()."""
    B, N, C = src.shape
    assert C % num_heads == 0
    F_ = prepared["w1"].shape[1]

    # --- generation-aware VMEM budget ---
    try:
        vmem_cap = int(pltpu.get_tpu_info().vmem_capacity_bytes)
    except Exception:
        vmem_cap = 64 << 20                     # conservative (v7x per-TC VMEM)

    nbytes = lambda a: int(a.size) * a.dtype.itemsize
    weight_bytes = sum(nbytes(v) for v in prepared.values())
    # rough per-batch-row f32 activation footprint inside the kernel
    per_b = 4 * N * (12 * C + 2 * F_ + num_heads * N)

    # --- batch tile: amortize per-step overhead, keep >=2 parallel grid steps,
    #     bound the activation footprint relative to this chip's VMEM ---
    if block_b is None:
        act_budget = max(vmem_cap // 3, 4 << 20)
        cand = max(1, min(B, act_budget // max(per_b, 1)))
        if B >= 2:
            cand = min(cand, max(1, B // 2))    # >=2 grid steps (megacore / v7x 2 TCs)
        while B % cand:
            cand -= 1
        block_b = cand
    assert B % block_b == 0
    grid = (B // block_b,)
    # TODO(synk): when B // block_b == 1, a second parallel grid axis over sequence
    #             tiles would be needed to occupy both v7x TensorCores.

    # --- always pass vmem_limit_bytes (v5e default scoped limit is only 16 MiB) ---
    io_bytes = 2 * 2 * block_b * N * C * src.dtype.itemsize   # src+out, double-buffered
    vmem_est = weight_bytes + io_bytes + block_b * per_b + (4 << 20)
    if vmem_limit_bytes is None:
        vmem_limit_bytes = int(min(max(vmem_est, 32 << 20),
                                   max(int(vmem_cap * 0.85), 32 << 20)))

    compiler_params = pltpu.CompilerParams(
        dimension_semantics=("parallel",),
        vmem_limit_bytes=vmem_limit_bytes)

    kernel = functools.partial(_encoder_layer_kernel, num_heads=num_heads)
    rep2 = lambda i: (0, 0)

    out = pl.pallas_call(
        kernel,
        out_shape=jax.ShapeDtypeStruct((B, N, C), src.dtype),
        grid=grid,
        in_specs=[
            pl.BlockSpec((block_b, N, C), lambda i: (i, 0, 0)),   # src tile
            pl.BlockSpec((1, C), rep2),                           # gamma_pre
            pl.BlockSpec((1, C), rep2),                           # beta_pre
            _resident_weight_spec((C, 3 * C)),                    # fused Wqkv (scaled Wq)
            _resident_weight_spec((C, C)),                        # Wproj
            pl.BlockSpec((1, C), rep2),                           # b_proj
            pl.BlockSpec((1, C), rep2),                           # gamma1
            pl.BlockSpec((1, C), rep2),                           # beta1
            _resident_weight_spec((C, F_)),                       # W1
            pl.BlockSpec((1, F_), rep2),                          # b1
            _resident_weight_spec((F_, C)),                       # W2
            pl.BlockSpec((1, C), rep2),                           # b2
        ],
        out_specs=pl.BlockSpec((block_b, N, C), lambda i: (i, 0, 0)),
        compiler_params=compiler_params,
    )(src, prepared["g_pre"], prepared["b_pre"], prepared["wqkv"],
      prepared["wproj"], prepared["b_proj"], prepared["g1"], prepared["b1"],
      prepared["w1"], prepared["b1_lin"], prepared["w2"], prepared["b2_lin"])
    return out


def transformer_encoder_layer_ref(src, p, num_heads):
    """Pure-JAX reference replicating the PyTorch forward (eval mode) exactly."""
    B, N, C = src.shape
    dh = C // num_heads
    scale = dh ** -0.5

    def ln(x, g, b, eps=1e-5):
        mu = jnp.mean(x, axis=-1, keepdims=True)
        var = jnp.mean((x - mu) ** 2, axis=-1, keepdims=True)
        return (x - mu) / jnp.sqrt(var + eps) * g + b

    xn = ln(src, p["g_pre"], p["b_pre"])
    qkv = xn @ p["w_qkv"].T                                       # (B, N, 3C)
    qkv = qkv.reshape(B, N, 3, num_heads, dh).transpose(2, 0, 3, 1, 4)
    q, k, v = qkv[0], qkv[1], qkv[2]                              # (B, H, N, dh)
    attn = (q @ jnp.swapaxes(k, -1, -2)) * scale
    attn = jax.nn.softmax(attn, axis=-1)
    ao = (attn @ v).transpose(0, 2, 1, 3).reshape(B, N, C)
    ao = ao @ p["w_proj"].T + p["b_proj"]
    a = src + ao                                                  # dropout/drop_path = identity
    y = ln(a, p["g1"], p["b1"])
    ff = jax.nn.relu(y @ p["w1"].T + p["b1_lin"]) @ p["w2"].T + p["b2_lin"]
    return y + ff


if __name__ == "__main__":
    key = jax.random.PRNGKey(0)
    ks = jax.random.split(key, 12)

    B, N, C = 2, 8, 32          # batch, sequence, d_model
    num_heads = 4
    F_ = 64                     # dim_feedforward

    def unif(k, shape, bound):
        return jax.random.uniform(k, shape, jnp.float32, -bound, bound)

    params = {
        "g_pre": 1.0 + 0.1 * jax.random.normal(ks[0], (C,), jnp.float32),
        "b_pre": 0.1 * jax.random.normal(ks[1], (C,), jnp.float32),
        "w_qkv": unif(ks[2], (3 * C, C), C ** -0.5),     # nn.Linear(C, 3C, bias=False)
        "w_proj": unif(ks[3], (C, C), C ** -0.5),        # nn.Linear(C, C)
        "b_proj": unif(ks[4], (C,), C ** -0.5),
        "g1": 1.0 + 0.1 * jax.random.normal(ks[5], (C,), jnp.float32),
        "b1": 0.1 * jax.random.normal(ks[6], (C,), jnp.float32),
        "w1": unif(ks[7], (F_, C), C ** -0.5),           # nn.Linear(C, F)
        "b1_lin": unif(ks[8], (F_,), C ** -0.5),
        "w2": unif(ks[9], (C, F_), F_ ** -0.5),          # nn.Linear(F, C)
        "b2_lin": unif(ks[10], (C,), F_ ** -0.5),
    }
    src = jax.random.normal(ks[11], (B, N, C), jnp.float32)

    # One-time weight relayout / bf16 cast (hoisted out of the forward path).
    prepared = prepare_params(params, num_heads, compute_dtype=jnp.bfloat16)

    out = transformer_encoder_layer_forward(src, prepared, num_heads)
    out = jax.block_until_ready(out)

    ref = transformer_encoder_layer_ref(src, params, num_heads)
    assert out.shape == (B, N, C)
    max_err = float(jnp.max(jnp.abs(out - ref)))
    # bf16 MXU operands with f32 accumulation -> slightly looser tolerance than pure f32.
    assert jnp.allclose(out, ref, atol=3e-2, rtol=3e-2), f"mismatch vs ref: {max_err}"

    print("KERNEL_OK")
</pallas_src>

<mosaic_0001>
module attributes {stable_mosaic.version = 11 : i64} {
  func.func @_encoder_layer_kernel(%arg0: i32, %arg1: memref<1x8x32xf32, #tpu.memory_space<vmem>>, %arg2: memref<1x32xf32, #tpu.memory_space<vmem>>, %arg3: memref<1x32xf32, #tpu.memory_space<vmem>>, %arg4: memref<32x96xbf16, #tpu.memory_space<vmem>>, %arg5: memref<32x32xbf16, #tpu.memory_space<vmem>>, %arg6: memref<1x32xf32, #tpu.memory_space<vmem>>, %arg7: memref<1x32xf32, #tpu.memory_space<vmem>>, %arg8: memref<1x32xf32, #tpu.memory_space<vmem>>, %arg9: memref<32x64xbf16, #tpu.memory_space<vmem>>, %arg10: memref<1x64xf32, #tpu.memory_space<vmem>>, %arg11: memref<64x32xbf16, #tpu.memory_space<vmem>>, %arg12: memref<1x32xf32, #tpu.memory_space<vmem>>, %arg13: memref<1x8x32xf32, #tpu.memory_space<vmem>>) attributes {dimension_semantics = [#tpu.dimension_semantics<parallel>], iteration_bounds = array<i64: 2>, scalar_prefetch = 0 : i64, scratch_operands = 0 : i64, tpu.core_type = #tpu.core_type<tc>, window_params = [{transform_indices = @transform_0, window_bounds = array<i64: 1, 8, 32>}, {pipeline_mode = #tpu.pipeline_mode<synchronous>, transform_indices = @transform_1, window_bounds = array<i64: 1, 32>}, {pipeline_mode = #tpu.pipeline_mode<synchronous>, transform_indices = @transform_2, window_bounds = array<i64: 1, 32>}, {pipeline_mode = #tpu.pipeline_mode<synchronous>, transform_indices = @transform_3, window_bounds = array<i64: 32, 96>}, {pipeline_mode = #tpu.pipeline_mode<synchronous>, transform_indices = @transform_4, window_bounds = array<i64: 32, 32>}, {pipeline_mode = #tpu.pipeline_mode<synchronous>, transform_indices = @transform_5, window_bounds = array<i64: 1, 32>}, {pipeline_mode = #tpu.pipeline_mode<synchronous>, transform_indices = @transform_6, window_bounds = array<i64: 1, 32>}, {pipeline_mode = #tpu.pipeline_mode<synchronous>, transform_indices = @transform_7, window_bounds = array<i64: 1, 32>}, {pipeline_mode = #tpu.pipeline_mode<synchronous>, transform_indices = @transform_8, window_bounds = array<i64: 32, 64>}, {pipeline_mode = #tpu.pipeline_mode<synchronous>, transform_indices = @transform_9, window_bounds = array<i64: 1, 64>}, {pipeline_mode = #tpu.pipeline_mode<synchronous>, transform_indices = @transform_10, window_bounds = array<i64: 64, 32>}, {pipeline_mode = #tpu.pipeline_mode<synchronous>, transform_indices = @transform_11, window_bounds = array<i64: 1, 32>}, {transform_indices = @transform_12, window_bounds = array<i64: 1, 8, 32>}]} {
    %c0 = arith.constant 0 : index
    %c0_0 = arith.constant 0 : index
    %c0_1 = arith.constant 0 : index
    %0 = vector.load %arg1[%c0, %c0_0, %c0_1] : memref<1x8x32xf32, #tpu.memory_space<vmem>>, vector<1x8x32xf32>
    %1 = vector.shape_cast %0 : vector<1x8x32xf32> to vector<8x32xf32>
    %c0_2 = arith.constant 0 : index
    %c0_3 = arith.constant 0 : index
    %2 = vector.load %arg2[%c0_2, %c0_3] : memref<1x32xf32, #tpu.memory_space<vmem>>, vector<1x32xf32>
    %c0_4 = arith.constant 0 : index
    %c0_5 = arith.constant 0 : index
    %3 = vector.load %arg3[%c0_4, %c0_5] : memref<1x32xf32, #tpu.memory_space<vmem>>, vector<1x32xf32>
    %cst = arith.constant dense<0.000000e+00> : vector<8xf32>
    %4 = vector.multi_reduction <add>, %1, %cst [1] : vector<8x32xf32> to vector<8xf32>
    %5 = vector.shape_cast %4 : vector<8xf32> to vector<8x1xf32>
    %cst_6 = arith.constant 3.200000e+01 : f32
    %6 = vector.broadcast %cst_6 : f32 to vector<8x1xf32>
    %7 = arith.divf %5, %6 : vector<8x1xf32>
    %8 = vector.broadcast %7 : vector<8x1xf32> to vector<8x32xf32>
    %9 = arith.subf %1, %8 : vector<8x32xf32>
    %10 = arith.mulf %9, %9 : vector<8x32xf32>
    %cst_7 = arith.constant dense<0.000000e+00> : vector<8xf32>
    %11 = vector.multi_reduction <add>, %10, %cst_7 [1] : vector<8x32xf32> to vector<8xf32>
    %12 = vector.shape_cast %11 : vector<8xf32> to vector<8x1xf32>
    %cst_8 = arith.constant 3.200000e+01 : f32
    %13 = vector.broadcast %cst_8 : f32 to vector<8x1xf32>
    %14 = arith.divf %12, %13 : vector<8x1xf32>
    %cst_9 = arith.constant 9.99999974E-6 : f32
    %15 = vector.broadcast %cst_9 : f32 to vector<8x1xf32>
    %16 = arith.addf %14, %15 : vector<8x1xf32>
    %17 = math.rsqrt %16 : vector<8x1xf32>
    %18 = vector.broadcast %17 : vector<8x1xf32> to vector<8x32xf32>
    %19 = arith.mulf %9, %18 : vector<8x32xf32>
    %20 = vector.broadcast %2 : vector<1x32xf32> to vector<8x32xf32>
    %21 = arith.mulf %19, %20 : vector<8x32xf32>
    %22 = vector.broadcast %3 : vector<1x32xf32> to vector<8x32xf32>
    %23 = arith.addf %21, %22 : vector<8x32xf32>
    %24 = arith.truncf %23 : vector<8x32xf32> to vector<8x32xbf16>
    %c0_10 = arith.constant 0 : index
    %c0_11 = arith.constant 0 : index
    %25 = vector.load %arg4[%c0_10, %c0_11] : memref<32x96xbf16, #tpu.memory_space<vmem>>, vector<32x96xbf16>
    %cst_12 = arith.constant dense<0.000000e+00> : vector<8x96xf32>
    %26 = tpu.matmul %24, %25, %cst_12 {dimension_numbers = #tpu.dot_dimension_numbers<[1], [0], [0], [1], [0, 0, 1, 1], [], []>} : vector<8x32xbf16>, vector<32x96xbf16>, vector<8x96xf32> -> vector<8x96xf32>
    %27 = vector.extract_strided_slice %26 {offsets = [0, 0], sizes = [8, 32], strides = [1, 1]} : vector<8x96xf32> to vector<8x32xf32>
    %28 = vector.shape_cast %27 : vector<8x32xf32> to vector<1x8x32xf32>
    %29 = vector.extract_strided_slice %26 {offsets = [0, 32], sizes = [8, 32], strides = [1, 1]} : vector<8x96xf32> to vector<8x32xf32>
    %30 = vector.shape_cast %29 : vector<8x32xf32> to vector<1x8x32xf32>
    %31 = vector.extract_strided_slice %26 {offsets = [0, 64], sizes = [8, 32], strides = [1, 1]} : vector<8x96xf32> to vector<8x32xf32>
    %32 = vector.shape_cast %31 : vector<8x32xf32> to vector<1x8x32xf32>
    %33 = vector.extract_strided_slice %28 {offsets = [0, 0, 0], sizes = [1, 8, 8], strides = [1, 1, 1]} : vector<1x8x32xf32> to vector<1x8x8xf32>
    %34 = arith.truncf %33 : vector<1x8x8xf32> to vector<1x8x8xbf16>
    %35 = vector.extract_strided_slice %30 {offsets = [0, 0, 0], sizes = [1, 8, 8], strides = [1, 1, 1]} : vector<1x8x32xf32> to vector<1x8x8xf32>
    %36 = arith.truncf %35 : vector<1x8x8xf32> to vector<1x8x8xbf16>
    %37 = vector.extract_strided_slice %32 {offsets = [0, 0, 0], sizes = [1, 8, 8], strides = [1, 1, 1]} : vector<1x8x32xf32> to vector<1x8x8xf32>
    %38 = arith.truncf %37 : vector<1x8x8xf32> to vector<1x8x8xbf16>
    "tpu.trace_start"() <{level = 10 : i32, message = "bnd,bmd->bnm"}> : () -> ()
    %cst_13 = arith.constant dense<0.000000e+00> : vector<1x8x8xf32>
    %39 = tpu.matmul %34, %36, %cst_13 {dimension_numbers = #tpu.dot_dimension_numbers<[2], [2], [1], [1], [0, 0, 0, 1, 1, 1], [0], [0]>} : vector<1x8x8xbf16>, vector<1x8x8xbf16>, vector<1x8x8xf32> -> vector<1x8x8xf32>
    "tpu.trace_stop"() : () -> ()
    %cst_14 = arith.constant dense<0xFF800000> : vector<1x8xf32>
    %40 = vector.multi_reduction <maximumf>, %39, %cst_14 [2] : vector<1x8x8xf32> to vector<1x8xf32>
    %41 = vector.shape_cast %40 : vector<1x8xf32> to vector<1x8x1xf32>
    %42 = vector.broadcast %41 : vector<1x8x1xf32> to vector<1x8x8xf32>
    %43 = arith.subf %39, %42 : vector<1x8x8xf32>
    %44 = math.exp %43 : vector<1x8x8xf32>
    %cst_15 = arith.constant dense<0.000000e+00> : vector<1x8xf32>
    %45 = vector.multi_reduction <add>, %44, %cst_15 [2] : vector<1x8x8xf32> to vector<1x8xf32>
    %46 = vector.shape_cast %45 : vector<1x8xf32> to vector<1x8x1xf32>
    %47 = tpu.reciprocal %46 {approx = true} : vector<1x8x1xf32> -> vector<1x8x1xf32>
    %48 = vector.broadcast %47 : vector<1x8x1xf32> to vector<1x8x8xf32>
    %49 = arith.mulf %44, %48 : vector<1x8x8xf32>
    %50 = arith.truncf %49 : vector<1x8x8xf32> to vector<1x8x8xbf16>
    "tpu.trace_start"() <{level = 10 : i32, message = "bnm,bmd->bnd"}> : () -> ()
    %cst_16 = arith.constant dense<0.000000e+00> : vector<1x8x8xf32>
    %51 = tpu.matmul %50, %38, %cst_16 {dimension_numbers = #tpu.dot_dimension_numbers<[2], [1], [1], [2], [0, 0, 0, 1, 1, 2], [0], [0]>} : vector<1x8x8xbf16>, vector<1x8x8xbf16>, vector<1x8x8xf32> -> vector<1x8x8xf32>
    "tpu.trace_stop"() : () -> ()
    %52 = vector.extract_strided_slice %28 {offsets = [0, 0, 8], sizes = [1, 8, 8], strides = [1, 1, 1]} : vector<1x8x32xf32> to vector<1x8x8xf32>
    %53 = arith.truncf %52 : vector<1x8x8xf32> to vector<1x8x8xbf16>
    %54 = vector.extract_strided_slice %30 {offsets = [0, 0, 8], sizes = [1, 8, 8], strides = [1, 1, 1]} : vector<1x8x32xf32> to vector<1x8x8xf32>
    %55 = arith.truncf %54 : vector<1x8x8xf32> to vector<1x8x8xbf16>
    %56 = vector.extract_strided_slice %32 {offsets = [0, 0, 8], sizes = [1, 8, 8], strides = [1, 1, 1]} : vector<1x8x32xf32> to vector<1x8x8xf32>
    %57 = arith.truncf %56 : vector<1x8x8xf32> to vector<1x8x8xbf16>
    "tpu.trace_start"() <{level = 10 : i32, message = "bnd,bmd->bnm"}> : () -> ()
    %cst_17 = arith.constant dense<0.000000e+00> : vector<1x8x8xf32>
    %58 = tpu.matmul %53, %55, %cst_17 {dimension_numbers = #tpu.dot_dimension_numbers<[2], [2], [1], [1], [0, 0, 0, 1, 1, 1], [0], [0]>} : vector<1x8x8xbf16>, vector<1x8x8xbf16>, vector<1x8x8xf32> -> vector<1x8x8xf32>
    "tpu.trace_stop"() : () -> ()
    %cst_18 = arith.constant dense<0xFF800000> : vector<1x8xf32>
    %59 = vector.multi_reduction <maximumf>, %58, %cst_18 [2] : vector<1x8x8xf32> to vector<1x8xf32>
    %60 = vector.shape_cast %59 : vector<1x8xf32> to vector<1x8x1xf32>
    %61 = vector.broadcast %60 : vector<1x8x1xf32> to vector<1x8x8xf32>
    %62 = arith.subf %58, %61 : vector<1x8x8xf32>
    %63 = math.exp %62 : vector<1x8x8xf32>
    %cst_19 = arith.constant dense<0.000000e+00> : vector<1x8xf32>
    %64 = vector.multi_reduction <add>, %63, %cst_19 [2] : vector<1x8x8xf32> to vector<1x8xf32>
    %65 = vector.shape_cast %64 : vector<1x8xf32> to vector<1x8x1xf32>
    %66 = tpu.reciprocal %65 {approx = true} : vector<1x8x1xf32> -> vector<1x8x1xf32>
    %67 = vector.broadcast %66 : vector<1x8x1xf32> to vector<1x8x8xf32>
    %68 = arith.mulf %63, %67 : vector<1x8x8xf32>
    %69 = arith.truncf %68 : vector<1x8x8xf32> to vector<1x8x8xbf16>
    "tpu.trace_start"() <{level = 10 : i32, message = "bnm,bmd->bnd"}> : () -> ()
    %cst_20 = arith.constant dense<0.000000e+00> : vector<1x8x8xf32>
    %70 = tpu.matmul %69, %57, %cst_20 {dimension_numbers = #tpu.dot_dimension_numbers<[2], [1], [1], [2], [0, 0, 0, 1, 1, 2], [0], [0]>} : vector<1x8x8xbf16>, vector<1x8x8xbf16>, vector<1x8x8xf32> -> vector<1x8x8xf32>
    "tpu.trace_stop"() : () -> ()
    %71 = vector.extract_strided_slice %28 {offsets = [0, 0, 16], sizes = [1, 8, 8], strides = [1, 1, 1]} : vector<1x8x32xf32> to vector<1x8x8xf32>
    %72 = arith.truncf %71 : vector<1x8x8xf32> to vector<1x8x8xbf16>
    %73 = vector.extract_strided_slice %30 {offsets = [0, 0, 16], sizes = [1, 8, 8], strides = [1, 1, 1]} : vector<1x8x32xf32> to vector<1x8x8xf32>
    %74 = arith.truncf %73 : vector<1x8x8xf32> to vector<1x8x8xbf16>
    %75 = vector.extract_strided_slice %32 {offsets = [0, 0, 16], sizes = [1, 8, 8], strides = [1, 1, 1]} : vector<1x8x32xf32> to vector<1x8x8xf32>
    %76 = arith.truncf %75 : vector<1x8x8xf32> to vector<1x8x8xbf16>
    "tpu.trace_start"() <{level = 10 : i32, message = "bnd,bmd->bnm"}> : () -> ()
    %cst_21 = arith.constant dense<0.000000e+00> : vector<1x8x8xf32>
    %77 = tpu.matmul %72, %74, %cst_21 {dimension_numbers = #tpu.dot_dimension_numbers<[2], [2], [1], [1], [0, 0, 0, 1, 1, 1], [0], [0]>} : vector<1x8x8xbf16>, vector<1x8x8xbf16>, vector<1x8x8xf32> -> vector<1x8x8xf32>
    "tpu.trace_stop"() : () -> ()
    %cst_22 = arith.constant dense<0xFF800000> : vector<1x8xf32>
    %78 = vector.multi_reduction <maximumf>, %77, %cst_22 [2] : vector<1x8x8xf32> to vector<1x8xf32>
    %79 = vector.shape_cast %78 : vector<1x8xf32> to vector<1x8x1xf32>
    %80 = vector.broadcast %79 : vector<1x8x1xf32> to vector<1x8x8xf32>
    %81 = arith.subf %77, %80 : vector<1x8x8xf32>
    %82 = math.exp %81 : vector<1x8x8xf32>
    %cst_23 = arith.constant dense<0.000000e+00> : vector<1x8xf32>
    %83 = vector.multi_reduction <add>, %82, %cst_23 [2] : vector<1x8x8xf32> to vector<1x8xf32>
    %84 = vector.shape_cast %83 : vector<1x8xf32> to vector<1x8x1xf32>
    %85 = tpu.reciprocal %84 {approx = true} : vector<1x8x1xf32> -> vector<1x8x1xf32>
    %86 = vector.broadcast %85 : vector<1x8x1xf32> to vector<1x8x8xf32>
    %87 = arith.mulf %82, %86 : vector<1x8x8xf32>
    %88 = arith.truncf %87 : vector<1x8x8xf32> to vector<1x8x8xbf16>
    "tpu.trace_start"() <{level = 10 : i32, message = "bnm,bmd->bnd"}> : () -> ()
    %cst_24 = arith.constant dense<0.000000e+00> : vector<1x8x8xf32>
    %89 = tpu.matmul %88, %76, %cst_24 {dimension_numbers = #tpu.dot_dimension_numbers<[2], [1], [1], [2], [0, 0, 0, 1, 1, 2], [0], [0]>} : vector<1x8x8xbf16>, vector<1x8x8xbf16>, vector<1x8x8xf32> -> vector<1x8x8xf32>
    "tpu.trace_stop"() : () -> ()
    %90 = vector.extract_strided_slice %28 {offsets = [0, 0, 24], sizes = [1, 8, 8], strides = [1, 1, 1]} : vector<1x8x32xf32> to vector<1x8x8xf32>
    %91 = arith.truncf %90 : vector<1x8x8xf32> to vector<1x8x8xbf16>
    %92 = vector.extract_strided_slice %30 {offsets = [0, 0, 24], sizes = [1, 8, 8], strides = [1, 1, 1]} : vector<1x8x32xf32> to vector<1x8x8xf32>
    %93 = arith.truncf %92 : vector<1x8x8xf32> to vector<1x8x8xbf16>
    %94 = vector.extract_strided_slice %32 {offsets = [0, 0, 24], sizes = [1, 8, 8], strides = [1, 1, 1]} : vector<1x8x32xf32> to vector<1x8x8xf32>
    %95 = arith.truncf %94 : vector<1x8x8xf32> to vector<1x8x8xbf16>
    "tpu.trace_start"() <{level = 10 : i32, message = "bnd,bmd->bnm"}> : () -> ()
    %cst_25 = arith.constant dense<0.000000e+00> : vector<1x8x8xf32>
    %96 = tpu.matmul %91, %93, %cst_25 {dimension_numbers = #tpu.dot_dimension_numbers<[2], [2], [1], [1], [0, 0, 0, 1, 1, 1], [0], [0]>} : vector<1x8x8xbf16>, vector<1x8x8xbf16>, vector<1x8x8xf32> -> vector<1x8x8xf32>
    "tpu.trace_stop"() : () -> ()
    %cst_26 = arith.constant dense<0xFF800000> : vector<1x8xf32>
    %97 = vector.multi_reduction <maximumf>, %96, %cst_26 [2] : vector<1x8x8xf32> to vector<1x8xf32>
    %98 = vector.shape_cast %97 : vector<1x8xf32> to vector<1x8x1xf32>
    %99 = vector.broadcast %98 : vector<1x8x1xf32> to vector<1x8x8xf32>
    %100 = arith.subf %96, %99 : vector<1x8x8xf32>
    %101 = math.exp %100 : vector<1x8x8xf32>
    %cst_27 = arith.constant dense<0.000000e+00> : vector<1x8xf32>
    %102 = vector.multi_reduction <add>, %101, %cst_27 [2] : vector<1x8x8xf32> to vector<1x8xf32>
    %103 = vector.shape_cast %102 : vector<1x8xf32> to vector<1x8x1xf32>
    %104 = tpu.reciprocal %103 {approx = true} : vector<1x8x1xf32> -> vector<1x8x1xf32>
    %105 = vector.broadcast %104 : vector<1x8x1xf32> to vector<1x8x8xf32>
    %106 = arith.mulf %101, %105 : vector<1x8x8xf32>
    %107 = arith.truncf %106 : vector<1x8x8xf32> to vector<1x8x8xbf16>
    "tpu.trace_start"() <{level = 10 : i32, message = "bnm,bmd->bnd"}> : () -> ()
    %cst_28 = arith.constant dense<0.000000e+00> : vector<1x8x8xf32>
    %108 = tpu.matmul %107, %95, %cst_28 {dimension_numbers = #tpu.dot_dimension_numbers<[2], [1], [1], [2], [0, 0, 0, 1, 1, 2], [0], [0]>} : vector<1x8x8xbf16>, vector<1x8x8xbf16>, vector<1x8x8xf32> -> vector<1x8x8xf32>
    "tpu.trace_stop"() : () -> ()
    %109 = tpu.concatenate %51, %70, %89, %108 in 2 : vector<1x8x8xf32>, vector<1x8x8xf32>, vector<1x8x8xf32>, vector<1x8x8xf32> -> vector<1x8x32xf32>
    %110 = vector.shape_cast %109 : vector<1x8x32xf32> to vector<8x32xf32>
    %111 = arith.truncf %110 : vector<8x32xf32> to vector<8x32xbf16>
    %c0_29 = arith.constant 0 : index
    %c0_30 = arith.constant 0 : index
    %112 = vector.load %arg5[%c0_29, %c0_30] : memref<32x32xbf16, #tpu.memory_space<vmem>>, vector<32x32xbf16>
    %cst_31 = arith.constant dense<0.000000e+00> : vector<8x32xf32>
    %113 = tpu.matmul %111, %112, %cst_31 {dimension_numbers = #tpu.dot_dimension_numbers<[1], [0], [0], [1], [0, 0, 1, 1], [], []>} : vector<8x32xbf16>, vector<32x32xbf16>, vector<8x32xf32> -> vector<8x32xf32>
    %c0_32 = arith.constant 0 : index
    %c0_33 = arith.constant 0 : index
    %114 = vector.load %arg6[%c0_32, %c0_33] : memref<1x32xf32, #tpu.memory_space<vmem>>, vector<1x32xf32>
    %115 = vector.broadcast %114 : vector<1x32xf32> to vector<8x32xf32>
    %116 = arith.addf %113, %115 : vector<8x32xf32>
    %117 = arith.addf %1, %116 : vector<8x32xf32>
    %c0_34 = arith.constant 0 : index
    %c0_35 = arith.constant 0 : index
    %118 = vector.load %arg7[%c0_34, %c0_35] : memref<1x32xf32, #tpu.memory_space<vmem>>, vector<1x32xf32>
    %c0_36 = arith.constant 0 : index
    %c0_37 = arith.constant 0 : index
    %119 = vector.load %arg8[%c0_36, %c0_37] : memref<1x32xf32, #tpu.memory_space<vmem>>, vector<1x32xf32>
    %cst_38 = arith.constant dense<0.000000e+00> : vector<8xf32>
    %120 = vector.multi_reduction <add>, %117, %cst_38 [1] : vector<8x32xf32> to vector<8xf32>
    %121 = vector.shape_cast %120 : vector<8xf32> to vector<8x1xf32>
    %cst_39 = arith.constant 3.200000e+01 : f32
    %122 = vector.broadcast %cst_39 : f32 to vector<8x1xf32>
    %123 = arith.divf %121, %122 : vector<8x1xf32>
    %124 = vector.broadcast %123 : vector<8x1xf32> to vector<8x32xf32>
    %125 = arith.subf %117, %124 : vector<8x32xf32>
    %126 = arith.mulf %125, %125 : vector<8x32xf32>
    %cst_40 = arith.constant dense<0.000000e+00> : vector<8xf32>
    %127 = vector.multi_reduction <add>, %126, %cst_40 [1] : vector<8x32xf32> to vector<8xf32>
    %128 = vector.shape_cast %127 : vector<8xf32> to vector<8x1xf32>
    %cst_41 = arith.constant 3.200000e+01 : f32
    %129 = vector.broadcast %cst_41 : f32 to vector<8x1xf32>
    %130 = arith.divf %128, %129 : vector<8x1xf32>
    %cst_42 = arith.constant 9.99999974E-6 : f32
    %131 = vector.broadcast %cst_42 : f32 to vector<8x1xf32>
    %132 = arith.addf %130, %131 : vector<8x1xf32>
    %133 = math.rsqrt %132 : vector<8x1xf32>
    %134 = vector.broadcast %133 : vector<8x1xf32> to vector<8x32xf32>
    %135 = arith.mulf %125, %134 : vector<8x32xf32>
    %136 = vector.broadcast %118 : vector<1x32xf32> to vector<8x32xf32>
    %137 = arith.mulf %135, %136 : vector<8x32xf32>
    %138 = vector.broadcast %119 : vector<1x32xf32> to vector<8x32xf32>
    %139 = arith.addf %137, %138 : vector<8x32xf32>
    %140 = arith.truncf %139 : vector<8x32xf32> to vector<8x32xbf16>
    %c0_43 = arith.constant 0 : index
    %c0_44 = arith.constant 0 : index
    %141 = vector.load %arg9[%c0_43, %c0_44] : memref<32x64xbf16, #tpu.memory_space<vmem>>, vector<32x64xbf16>
    %cst_45 = arith.constant dense<0.000000e+00> : vector<8x64xf32>
    %142 = tpu.matmul %140, %141, %cst_45 {dimension_numbers = #tpu.dot_dimension_numbers<[1], [0], [0], [1], [0, 0, 1, 1], [], []>} : vector<8x32xbf16>, vector<32x64xbf16>, vector<8x64xf32> -> vector<8x64xf32>
    %c0_46 = arith.constant 0 : index
    %c0_47 = arith.constant 0 : index
    %143 = vector.load %arg10[%c0_46, %c0_47] : memref<1x64xf32, #tpu.memory_space<vmem>>, vector<1x64xf32>
    %144 = vector.broadcast %143 : vector<1x64xf32> to vector<8x64xf32>
    %145 = arith.addf %142, %144 : vector<8x64xf32>
    %cst_48 = arith.constant 0.000000e+00 : f32
    %146 = vector.broadcast %cst_48 : f32 to vector<8x64xf32>
    %147 = arith.maximumf %145, %146 : vector<8x64xf32>
    %148 = arith.truncf %147 : vector<8x64xf32> to vector<8x64xbf16>
    %c0_49 = arith.constant 0 : index
    %c0_50 = arith.constant 0 : index
    %149 = vector.load %arg11[%c0_49, %c0_50] : memref<64x32xbf16, #tpu.memory_space<vmem>>, vector<64x32xbf16>
    %cst_51 = arith.constant dense<0.000000e+00> : vector<8x32xf32>
    %150 = tpu.matmul %148, %149, %cst_51 {dimension_numbers = #tpu.dot_dimension_numbers<[1], [0], [0], [1], [0, 0, 1, 1], [], []>} : vector<8x64xbf16>, vector<64x32xbf16>, vector<8x32xf32> -> vector<8x32xf32>
    %c0_52 = arith.constant 0 : index
    %c0_53 = arith.constant 0 : index
    %151 = vector.load %arg12[%c0_52, %c0_53] : memref<1x32xf32, #tpu.memory_space<vmem>>, vector<1x32xf32>
    %152 = vector.broadcast %151 : vector<1x32xf32> to vector<8x32xf32>
    %153 = arith.addf %150, %152 : vector<8x32xf32>
    %154 = arith.addf %139, %153 : vector<8x32xf32>
    %155 = vector.shape_cast %154 : vector<8x32xf32> to vector<1x8x32xf32>
    %c0_54 = arith.constant 0 : index
    %c0_55 = arith.constant 0 : index
    %c0_56 = arith.constant 0 : index
    %156 = vector.load %arg13[%c0_54, %c0_55, %c0_56] : memref<1x8x32xf32, #tpu.memory_space<vmem>>, vector<1x8x32xf32>
    tpu.vector_store %arg13[%c0_54, %c0_55, %c0_56], %155 {strides = array<i32>} : memref<1x8x32xf32, #tpu.memory_space<vmem>>, vector<1x8x32xf32>,
    return
  }
  func.func @transform_0(%arg0: i32) -> (i32, i32, i32) {
    %c0_i32 = arith.constant 0 : i32
    %c0_i32_0 = arith.constant 0 : i32
    %c0_i32_1 = arith.constant 0 : i32
    return %arg0, %c0_i32, %c0_i32_0 : i32, i32, i32
  }
  func.func @transform_1(%arg0: i32) -> (i32, i32) {
    %c0_i32 = arith.constant 0 : i32
    %c0_i32_0 = arith.constant 0 : i32
    %c0_i32_1 = arith.constant 0 : i32
    return %c0_i32, %c0_i32_0 : i32, i32
  }
  func.func @transform_2(%arg0: i32) -> (i32, i32) {
    %c0_i32 = arith.constant 0 : i32
    %c0_i32_0 = arith.constant 0 : i32
    %c0_i32_1 = arith.constant 0 : i32
    return %c0_i32, %c0_i32_0 : i32, i32
  }
  func.func @transform_3(%arg0: i32) -> (i32, i32) {
    %c0_i32 = arith.constant 0 : i32
    %c0_i32_0 = arith.constant 0 : i32
    %c0_i32_1 = arith.constant 0 : i32
    return %c0_i32, %c0_i32_0 : i32, i32
  }
  func.func @transform_4(%arg0: i32) -> (i32, i32) {
    %c0_i32 = arith.constant 0 : i32
    %c0_i32_0 = arith.constant 0 : i32
    %c0_i32_1 = arith.constant 0 : i32
    return %c0_i32, %c0_i32_0 : i32, i32
  }
  func.func @transform_5(%arg0: i32) -> (i32, i32) {
    %c0_i32 = arith.constant 0 : i32
    %c0_i32_0 = arith.constant 0 : i32
    %c0_i32_1 = arith.constant 0 : i32
    return %c0_i32, %c0_i32_0 : i32, i32
  }
  func.func @transform_6(%arg0: i32) -> (i32, i32) {
    %c0_i32 = arith.constant 0 : i32
    %c0_i32_0 = arith.constant 0 : i32
    %c0_i32_1 = arith.constant 0 : i32
    return %c0_i32, %c0_i32_0 : i32, i32
  }
  func.func @transform_7(%arg0: i32) -> (i32, i32) {
    %c0_i32 = arith.constant 0 : i32
    %c0_i32_0 = arith.constant 0 : i32
    %c0_i32_1 = arith.constant 0 : i32
    return %c0_i32, %c0_i32_0 : i32, i32
  }
  func.func @transform_8(%arg0: i32) -> (i32, i32) {
    %c0_i32 = arith.constant 0 : i32
    %c0_i32_0 = arith.constant 0 : i32
    %c0_i32_1 = arith.constant 0 : i32
    return %c0_i32, %c0_i32_0 : i32, i32
  }
  func.func @transform_9(%arg0: i32) -> (i32, i32) {
    %c0_i32 = arith.constant 0 : i32
    %c0_i32_0 = arith.constant 0 : i32
    %c0_i32_1 = arith.constant 0 : i32
    return %c0_i32, %c0_i32_0 : i32, i32
  }
  func.func @transform_10(%arg0: i32) -> (i32, i32) {
    %c0_i32 = arith.constant 0 : i32
    %c0_i32_0 = arith.constant 0 : i32
    %c0_i32_1 = arith.constant 0 : i32
    return %c0_i32, %c0_i32_0 : i32, i32
  }
  func.func @transform_11(%arg0: i32) -> (i32, i32) {
    %c0_i32 = arith.constant 0 : i32
    %c0_i32_0 = arith.constant 0 : i32
    %c0_i32_1 = arith.constant 0 : i32
    return %c0_i32, %c0_i32_0 : i32, i32
  }
  func.func @transform_12(%arg0: i32) -> (i32, i32, i32) {
    %c0_i32 = arith.constant 0 : i32
    %c0_i32_0 = arith.constant 0 : i32
    %c0_i32_1 = arith.constant 0 : i32
    return %arg0, %c0_i32, %c0_i32_0 : i32, i32, i32
  }
}

</mosaic_0001>

<llo_original>
// kernel: tpu_custom_call.1
$region0: #{tpu_custom_call.1}
  #allocation0 [shape = 'u32[]', space=smem, size = 0x4, offset = 0x4, fixed_abs, tag = 'smem constant byte address 0x4 - core index']
  #allocation1 [shape = 'u32[144,128]{1,0:T(1,128)}', space=vmem, size = 0x12000, scoped, tag = 'internal scratch']
  %s0 = inlined_call_operand.vmem [shape: f32[2,8,32], index: 0, kind: input, shape index: {}]
  %s1 = inlined_call_operand.vmem [shape: f32[1,32], index: 1, kind: input, shape index: {}]
  %s2 = inlined_call_operand.vmem [shape: f32[1,32], index: 2, kind: input, shape index: {}]
  %s3 = inlined_call_operand.vmem [shape: bf16[32,96], index: 3, kind: input, shape index: {}]
  %s4 = inlined_call_operand.vmem [shape: bf16[32,32], index: 4, kind: input, shape index: {}]
  %s5 = inlined_call_operand.vmem [shape: f32[1,32], index: 5, kind: input, shape index: {}]
  %s6 = inlined_call_operand.vmem [shape: f32[1,32], index: 6, kind: input, shape index: {}]
  %s7 = inlined_call_operand.vmem [shape: f32[1,32], index: 7, kind: input, shape index: {}]
  %s8 = inlined_call_operand.hbm [shape: bf16[32,64], index: 8, kind: input, shape index: {}]
  %s9 = inlined_call_operand.vmem [shape: f32[1,64], index: 9, kind: input, shape index: {}]
  %s10 = inlined_call_operand.vmem [shape: bf16[64,32], index: 10, kind: input, shape index: {}]
  %s11 = inlined_call_operand.vmem [shape: f32[1,32], index: 11, kind: input, shape index: {}]
  %s12 = inlined_call_operand.hbm [shape: f32[2,8,32], index: 12, kind: output, shape index: {}]
  %s13 = sld [smem:[#allocation0]]
  $region85: #{tpu_custom_call.1} parent=0
    _
  %s15 = ssub.s32 1, %s13
  %s16 = scalar_select 0, %s15, %s13
  $region1: #{tpu_custom_call.1} parent=0
    #allocation2 [shape = 'u8[8192]{0}', space=vmem, size = 0x2000, scoped, tag = 'input window, operand 8, single buffered']
    #allocation3 [shape = 's32[2]{0}', space=sflag, size = 0x8, scoped, tag = 'scoped memory for tpu_custom_call.1']
    #allocation4 [shape = 's32[2]{0}', space=sflag, size = 0x8, scoped, tag = 'scoped memory for tpu_custom_call.1']
    #allocation5 [shape = 'u8[8192]{0}', space=vmem, size = 0x2000, scoped, tag = 'output window, operand 0']
    %17 = vsyncpa [#allocation3], 0
    %18 = vsyncpa [#allocation4], 0
    %s19 = scalar_lea.sflag [#allocation4], 1
    %20 = vsyncpa %s19, 0
    loop: start=0, step=1, limit=4
    $region2: #{tpu_custom_call.1} parent=1 // loop_pre_header
      _
    $region3: #{tpu_custom_call.1} parent=1 // loop_header
      %s22 = sphi 0, %s26
      %p23 = scmp.ge.s32.totalorder %s22, 4
      %s32 = sphi 0, %s34
      %s35 = sphi 0, %s32
      %s36 = sphi 0, %s35
      %s52 = sphi 0, %s36
      %s56 = sphi 0, %s56
      %s58 = sphi 0, %s56
      %s59 = sphi 0, %s58
      %s73 = sphi 0, %s59
      %s77 = sphi 0, %s77
      %s79 = sphi 0, %s77
      %s80 = sphi 0, %s79
      %s94 = sphi 0, %s80
      %s98 = sphi 0, %s98
      %s100 = sphi 0, %s98
      %s101 = sphi 0, %s100
      %s115 = sphi 0, %s101
      %s119 = sphi 0, %s119
      %s121 = sphi 0, %s119
      %s122 = sphi 0, %s121
      %s136 = sphi 0, %s122
      %s140 = sphi 0, %s140
      %s142 = sphi 0, %s140
      %s143 = sphi 0, %s142
      %s157 = sphi 0, %s143
      %s161 = sphi 0, %s161
      %s163 = sphi 0, %s161
      %s164 = sphi 0, %s163
      %s178 = sphi 0, %s164
      %s182 = sphi 0, %s182
      %s184 = sphi 0, %s182
      %s185 = sphi 0, %s184
      %s199 = sphi 0, %s185
      %s203 = sphi 0, %s203
      %s205 = sphi 0, %s203
      %s206 = sphi 0, %s205
      %s220 = sphi 0, %s206
      %s224 = sphi 0, %s224
      %s226 = sphi 0, %s224
      %s227 = sphi 0, %s226
      %s241 = sphi 0, %s227
      %s245 = sphi 0, %s245
      %s247 = sphi 0, %s245
      %s248 = sphi 0, %s247
      %s262 = sphi 0, %s248
      %s266 = sphi 0, %s266
      %s268 = sphi 0, %s266
      %s269 = sphi 0, %s268
      %s283 = sphi 0, %s269
      %s289 = sphi 0, %s291
      %s292 = sphi 0, %s289
      %s293 = sphi 0, %s292
      %s309 = sphi 0, %s293
    $region4: #{tpu_custom_call.1} parent=1 // loop_header_branch
      %25 = sbr.rel (%p23) target = $region8
    $region5: #{tpu_custom_call.1} parent=1 // loop_body
      %s27 = ssub.s32 %s22, 1
      %s28 = ssub.s32 %s22, 2
      %s29 = sadd.s32 %s22, 1
      %s30 = ssub.s32 %s22, %s29
      %p31 = scmp.eq.s32.totalorder %s30, 0
      %s33 = sadd.s32 %s32, 1
      %s34 = scalar_select %p31, %s32, %s33
      %p37 = pneg %p31
      %p38 = scmp.eq.s32.totalorder %s22, 1
      %p39 = por %p37, %p38
      %p40 = scmp.ne.s32.totalorder %s32, %s35
      %p41 = scmp.eq.s32.totalorder %s22, 0
      %p42 = por %p40, %p41
      %p43 = scmp.ne.s32.totalorder %s32, %s35
      %p44 = scmp.eq.s32.totalorder %s27, 1
      %p45 = por %p43, %p44
      %p46 = scmp.ne.s32.totalorder %s35, %s36
      %p47 = scmp.eq.s32.totalorder %s27, 0
      %p48 = por %p46, %p47
      %p49 = scmp.ne.s32.totalorder %s35, %s36
      %p50 = scmp.eq.s32.totalorder %s28, 1
      %p51 = por %p49, %p50
      %p53 = scmp.ne.s32.totalorder %s36, %s52
      %p54 = scmp.eq.s32.totalorder %s28, 0
      %p55 = por %p53, %p54
      %s57 = sadd.s32 %s56, 1
      %p60 = scmp.eq.s32.totalorder %s22, 1
      %p61 = scmp.ne.s32.totalorder %s56, %s58
      %p62 = scmp.eq.s32.totalorder %s22, 0
      %p63 = por %p61, %p62
      %p64 = scmp.ne.s32.totalorder %s56, %s58
      %p65 = scmp.eq.s32.totalorder %s27, 1
      %p66 = por %p64, %p65
      %p67 = scmp.ne.s32.totalorder %s58, %s59
      %p68 = scmp.eq.s32.totalorder %s27, 0
      %p69 = por %p67, %p68
      %p70 = scmp.ne.s32.totalorder %s58, %s59
      %p71 = scmp.eq.s32.totalorder %s28, 1
      %p72 = por %p70, %p71
      %p74 = scmp.ne.s32.totalorder %s59, %s73
      %p75 = scmp.eq.s32.totalorder %s28, 0
      %p76 = por %p74, %p75
      %s78 = sadd.s32 %s77, 1
      %p81 = scmp.eq.s32.totalorder %s22, 1
      %p82 = scmp.ne.s32.totalorder %s77, %s79
      %p83 = scmp.eq.s32.totalorder %s22, 0
      %p84 = por %p82, %p83
      %p85 = scmp.ne.s32.totalorder %s77, %s79
      %p86 = scmp.eq.s32.totalorder %s27, 1
      %p87 = por %p85, %p86
      %p88 = scmp.ne.s32.totalorder %s79, %s80
      %p89 = scmp.eq.s32.totalorder %s27, 0
      %p90 = por %p88, %p89
      %p91 = scmp.ne.s32.totalorder %s79, %s80
      %p92 = scmp.eq.s32.totalorder %s28, 1
      %p93 = por %p91, %p92
      %p95 = scmp.ne.s32.totalorder %s80, %s94
      %p96 = scmp.eq.s32.totalorder %s28, 0
      %p97 = por %p95, %p96
      %s99 = sadd.s32 %s98, 1
      %p102 = scmp.eq.s32.totalorder %s22, 1
      %p103 = scmp.ne.s32.totalorder %s98, %s100
      %p104 = scmp.eq.s32.totalorder %s22, 0
      %p105 = por %p103, %p104
      %p106 = scmp.ne.s32.totalorder %s98, %s100
      %p107 = scmp.eq.s32.totalorder %s27, 1
      %p108 = por %p106, %p107
      %p109 = scmp.ne.s32.totalorder %s100, %s101
      %p110 = scmp.eq.s32.totalorder %s27, 0
      %p111 = por %p109, %p110
      %p112 = scmp.ne.s32.totalorder %s100, %s101
      %p113 = scmp.eq.s32.totalorder %s28, 1
      %p114 = por %p112, %p113
      %p116 = scmp.ne.s32.totalorder %s101, %s115
      %p117 = scmp.eq.s32.totalorder %s28, 0
      %p118 = por %p116, %p117
      %s120 = sadd.s32 %s119, 1
      %p123 = scmp.eq.s32.totalorder %s22, 1
      %p124 = scmp.ne.s32.totalorder %s119, %s121
      %p125 = scmp.eq.s32.totalorder %s22, 0
      %p126 = por %p124, %p125
      %p127 = scmp.ne.s32.totalorder %s119, %s121
      %p128 = scmp.eq.s32.totalorder %s27, 1
      %p129 = por %p127, %p128
      %p130 = scmp.ne.s32.totalorder %s121, %s122
      %p131 = scmp.eq.s32.totalorder %s27, 0
      %p132 = por %p130, %p131
      %p133 = scmp.ne.s32.totalorder %s121, %s122
      %p134 = scmp.eq.s32.totalorder %s28, 1
      %p135 = por %p133, %p134
      %p137 = scmp.ne.s32.totalorder %s122, %s136
      %p138 = scmp.eq.s32.totalorder %s28, 0
      %p139 = por %p137, %p138
      %s141 = sadd.s32 %s140, 1
      %p144 = scmp.eq.s32.totalorder %s22, 1
      %p145 = scmp.ne.s32.totalorder %s140, %s142
      %p146 = scmp.eq.s32.totalorder %s22, 0
      %p147 = por %p145, %p146
      %p148 = scmp.ne.s32.totalorder %s140, %s142
      %p149 = scmp.eq.s32.totalorder %s27, 1
      %p150 = por %p148, %p149
      %p151 = scmp.ne.s32.totalorder %s142, %s143
      %p152 = scmp.eq.s32.totalorder %s27, 0
      %p153 = por %p151, %p152
      %p154 = scmp.ne.s32.totalorder %s142, %s143
      %p155 = scmp.eq.s32.totalorder %s28, 1
      %p156 = por %p154, %p155
      %p158 = scmp.ne.s32.totalorder %s143, %s157
      %p159 = scmp.eq.s32.totalorder %s28, 0
      %p160 = por %p158, %p159
      %s162 = sadd.s32 %s161, 1
      %p165 = scmp.eq.s32.totalorder %s22, 1
      %p166 = scmp.ne.s32.totalorder %s161, %s163
      %p167 = scmp.eq.s32.totalorder %s22, 0
      %p168 = por %p166, %p167
      %p169 = scmp.ne.s32.totalorder %s161, %s163
      %p170 = scmp.eq.s32.totalorder %s27, 1
      %p171 = por %p169, %p170
      %p172 = scmp.ne.s32.totalorder %s163, %s164
      %p173 = scmp.eq.s32.totalorder %s27, 0
      %p174 = por %p172, %p173
      %p175 = scmp.ne.s32.totalorder %s163, %s164
      %p176 = scmp.eq.s32.totalorder %s28, 1
      %p177 = por %p175, %p176
      %p179 = scmp.ne.s32.totalorder %s164, %s178
      %p180 = scmp.eq.s32.totalorder %s28, 0
      %p181 = por %p179, %p180
      %s183 = sadd.s32 %s182, 1
      %p186 = scmp.eq.s32.totalorder %s22, 1
      %p187 = scmp.ne.s32.totalorder %s182, %s184
      %p188 = scmp.eq.s32.totalorder %s22, 0
      %p189 = por %p187, %p188
      %p190 = scmp.ne.s32.totalorder %s182, %s184
      %p191 = scmp.eq.s32.totalorder %s27, 1
      %p192 = por %p190, %p191
      %p193 = scmp.ne.s32.totalorder %s184, %s185
      %p194 = scmp.eq.s32.totalorder %s27, 0
      %p195 = por %p193, %p194
      %p196 = scmp.ne.s32.totalorder %s184, %s185
      %p197 = scmp.eq.s32.totalorder %s28, 1
      %p198 = por %p196, %p197
      %p200 = scmp.ne.s32.totalorder %s185, %s199
      %p201 = scmp.eq.s32.totalorder %s28, 0
      %p202 = por %p200, %p201
      %s204 = sadd.s32 %s203, 1
      %p207 = scmp.eq.s32.totalorder %s22, 1
      %p208 = scmp.ne.s32.totalorder %s203, %s205
      %p209 = scmp.eq.s32.totalorder %s22, 0
      %p210 = por %p208, %p209
      %p211 = scmp.ne.s32.totalorder %s203, %s205
      %p212 = scmp.eq.s32.totalorder %s27, 1
      %p213 = por %p211, %p212
      %p214 = scmp.ne.s32.totalorder %s205, %s206
      %p215 = scmp.eq.s32.totalorder %s27, 0
      %p216 = por %p214, %p215
      %p217 = scmp.ne.s32.totalorder %s205, %s206
      %p218 = scmp.eq.s32.totalorder %s28, 1
      %p219 = por %p217, %p218
      %p221 = scmp.ne.s32.totalorder %s206, %s220
      %p222 = scmp.eq.s32.totalorder %s28, 0
      %p223 = por %p221, %p222
      %s225 = sadd.s32 %s224, 1
      %p228 = scmp.eq.s32.totalorder %s22, 1
      %p229 = scmp.ne.s32.totalorder %s224, %s226
      %p230 = scmp.eq.s32.totalorder %s22, 0
      %p231 = por %p229, %p230
      %p232 = scmp.ne.s32.totalorder %s224, %s226
      %p233 = scmp.eq.s32.totalorder %s27, 1
      %p234 = por %p232, %p233
      %p235 = scmp.ne.s32.totalorder %s226, %s227
      %p236 = scmp.eq.s32.totalorder %s27, 0
      %p237 = por %p235, %p236
      %p238 = scmp.ne.s32.totalorder %s226, %s227
      %p239 = scmp.eq.s32.totalorder %s28, 1
      %p240 = por %p238, %p239
      %p242 = scmp.ne.s32.totalorder %s227, %s241
      %p243 = scmp.eq.s32.totalorder %s28, 0
      %p244 = por %p242, %p243
      %s246 = sadd.s32 %s245, 1
      %p249 = scmp.eq.s32.totalorder %s22, 1
      %p250 = scmp.ne.s32.totalorder %s245, %s247
      %p251 = scmp.eq.s32.totalorder %s22, 0
      %p252 = por %p250, %p251
      %p253 = scmp.ne.s32.totalorder %s245, %s247
      %p254 = scmp.eq.s32.totalorder %s27, 1
      %p255 = por %p253, %p254
      %p256 = scmp.ne.s32.totalorder %s247, %s248
      %p257 = scmp.eq.s32.totalorder %s27, 0
      %p258 = por %p256, %p257
      %p259 = scmp.ne.s32.totalorder %s247, %s248
      %p260 = scmp.eq.s32.totalorder %s28, 1
      %p261 = por %p259, %p260
      %p263 = scmp.ne.s32.totalorder %s248, %s262
      %p264 = scmp.eq.s32.totalorder %s28, 0
      %p265 = por %p263, %p264
      %s267 = sadd.s32 %s266, 1
      %p270 = scmp.eq.s32.totalorder %s22, 1
      %p271 = scmp.ne.s32.totalorder %s266, %s268
      %p272 = scmp.eq.s32.totalorder %s22, 0
      %p273 = por %p271, %p272
      %p274 = scmp.ne.s32.totalorder %s266, %s268
      %p275 = scmp.eq.s32.totalorder %s27, 1
      %p276 = por %p274, %p275
      %p277 = scmp.ne.s32.totalorder %s268, %s269
      %p278 = scmp.eq.s32.totalorder %s27, 0
      %p279 = por %p277, %p278
      %p280 = scmp.ne.s32.totalorder %s268, %s269
      %p281 = scmp.eq.s32.totalorder %s28, 1
      %p282 = por %p280, %p281
      %p284 = scmp.ne.s32.totalorder %s269, %s283
      %p285 = scmp.eq.s32.totalorder %s28, 0
      %p286 = por %p284, %p285
      %s287 = ssub.s32 %s22, %s29
      %p288 = scmp.eq.s32.totalorder %s287, 0
      %s290 = sadd.s32 %s289, 1
      %s291 = scalar_select %p288, %s289, %s290
      %p294 = pneg %p288
      %p295 = scmp.eq.s32.totalorder %s22, 1
      %p296 = por %p294, %p295
      %p297 = scmp.ne.s32.totalorder %s289, %s292
      %p298 = scmp.eq.s32.totalorder %s22, 0
      %p299 = por %p297, %p298
      %p300 = scmp.ne.s32.totalorder %s289, %s292
      %p301 = scmp.eq.s32.totalorder %s27, 1
      %p302 = por %p300, %p301
      %p303 = scmp.ne.s32.totalorder %s292, %s293
      %p304 = scmp.eq.s32.totalorder %s27, 0
      %p305 = por %p303, %p304
      %p306 = scmp.ne.s32.totalorder %s292, %s293
      %p307 = scmp.eq.s32.totalorder %s28, 1
      %p308 = por %p306, %p307
      %p310 = scmp.ne.s32.totalorder %s293, %s309
      %p311 = scmp.eq.s32.totalorder %s28, 0
      %p312 = por %p310, %p311
      %p313 = scmp.le.s32.totalorder 1, %s22
      %p314 = scmp.lt.s32.totalorder %s22, 3
      %p315 = pnand %p313, %p314
      %p316 = pneg %p315
      // Predicated region
      $region9: #{tpu_custom_call.1} parent=5 // pred_check
        _
      $region10: #{tpu_custom_call.1} parent=5 // pred_check_branch
        %318 = sbr.rel (%p315) target = $region12
      $region11: #{tpu_custom_call.1} parent=5 // pred_region
        %s319 = ssub.s32 %s22, 1
        // Predicated region
        $region13: #{tpu_custom_call.1} parent=11 // pred_check
          %p320 = pneg %p69
        $region14: #{tpu_custom_call.1} parent=11 // pred_check_branch
          %322 = sbr.rel (%p320) target = $region16
        $region15: #{tpu_custom_call.1} parent=11 // pred_region
          _
        $region16: #{tpu_custom_call.1} parent=11 // pred_fallthru
          _
        // Predicated region
        $region17: #{tpu_custom_call.1} parent=11 // pred_check
          %p323 = pneg %p90
        $region18: #{tpu_custom_call.1} parent=11 // pred_check_branch
          %325 = sbr.rel (%p323) target = $region20
        $region19: #{tpu_custom_call.1} parent=11 // pred_region
          _
        $region20: #{tpu_custom_call.1} parent=11 // pred_fallthru
          _
        // Predicated region
        $region21: #{tpu_custom_call.1} parent=11 // pred_check
          %p326 = pneg %p111
        $region22: #{tpu_custom_call.1} parent=11 // pred_check_branch
          %328 = sbr.rel (%p326) target = $region24
        $region23: #{tpu_custom_call.1} parent=11 // pred_region
          _
        $region24: #{tpu_custom_call.1} parent=11 // pred_fallthru
          _
        // Predicated region
        $region25: #{tpu_custom_call.1} parent=11 // pred_check
          %p329 = pneg %p132
        $region26: #{tpu_custom_call.1} parent=11 // pred_check_branch
          %331 = sbr.rel (%p329) target = $region28
        $region27: #{tpu_custom_call.1} parent=11 // pred_region
          _
        $region28: #{tpu_custom_call.1} parent=11 // pred_fallthru
          _
        // Predicated region
        $region29: #{tpu_custom_call.1} parent=11 // pred_check
          %p332 = pneg %p153
        $region30: #{tpu_custom_call.1} parent=11 // pred_check_branch
          %334 = sbr.rel (%p332) target = $region32
        $region31: #{tpu_custom_call.1} parent=11 // pred_region
          _
        $region32: #{tpu_custom_call.1} parent=11 // pred_fallthru
          _
        // Predicated region
        $region33: #{tpu_custom_call.1} parent=11 // pred_check
          %p335 = pneg %p174
        $region34: #{tpu_custom_call.1} parent=11 // pred_check_branch
          %337 = sbr.rel (%p335) target = $region36
        $region35: #{tpu_custom_call.1} parent=11 // pred_region
          _
        $region36: #{tpu_custom_call.1} parent=11 // pred_fallthru
          _
        // Predicated region
        $region37: #{tpu_custom_call.1} parent=11 // pred_check
          %p338 = pneg %p195
        $region38: #{tpu_custom_call.1} parent=11 // pred_check_branch
          %340 = sbr.rel (%p338) target = $region40
        $region39: #{tpu_custom_call.1} parent=11 // pred_region
          _
        $region40: #{tpu_custom_call.1} parent=11 // pred_fallthru
          _
        // Predicated region
        $region41: #{tpu_custom_call.1} parent=11 // pred_check
          %p341 = pneg %p216
        $region42: #{tpu_custom_call.1} parent=11 // pred_check_branch
          %343 = sbr.rel (%p341) target = $region44
        $region43: #{tpu_custom_call.1} parent=11 // pred_region
          %s345 = ssub.s32 256, 256
          %346 = vsyncadd [#allocation3], %s345
          %s347 = sshll.u32 [#allocation2], 4
          %s348 = int_to_ptr.vmem [resolvable:$true] %s347
          %353 = dma.hbm_to_vmem [thread:$0]  %s8, 256, %s348, [#allocation3], 64, 64, 4
        $region44: #{tpu_custom_call.1} parent=11 // pred_fallthru
          _
        // Predicated region
        $region45: #{tpu_custom_call.1} parent=11 // pred_check
          %p354 = pneg %p237
        $region46: #{tpu_custom_call.1} parent=11 // pred_check_branch
          %356 = sbr.rel (%p354) target = $region48
        $region47: #{tpu_custom_call.1} parent=11 // pred_region
          _
        $region48: #{tpu_custom_call.1} parent=11 // pred_fallthru
          _
        // Predicated region
        $region49: #{tpu_custom_call.1} parent=11 // pred_check
          %p357 = pneg %p258
        $region50: #{tpu_custom_call.1} parent=11 // pred_check_branch
          %359 = sbr.rel (%p357) target = $region52
        $region51: #{tpu_custom_call.1} parent=11 // pred_region
          _
        $region52: #{tpu_custom_call.1} parent=11 // pred_fallthru
          _
        // Predicated region
        $region53: #{tpu_custom_call.1} parent=11 // pred_check
          %p360 = pneg %p279
        $region54: #{tpu_custom_call.1} parent=11 // pred_check_branch
          %362 = sbr.rel (%p360) target = $region56
        $region55: #{tpu_custom_call.1} parent=11 // pred_region
          _
        $region56: #{tpu_custom_call.1} parent=11 // pred_fallthru
          _
      $region12: #{tpu_custom_call.1} parent=5 // pred_fallthru
        _
      %p363 = scmp.lt.s32.totalorder %s22, 2
      // Predicated region
      $region57: #{tpu_custom_call.1} parent=5 // pred_check
        %p364 = pneg %p363
      $region58: #{tpu_custom_call.1} parent=5 // pred_check_branch
        %366 = sbr.rel (%p364) target = $region60
      $region59: #{tpu_custom_call.1} parent=5 // pred_region
        // Predicated region
        $region61: #{tpu_custom_call.1} parent=59 // pred_check
          %p367 = pneg %p42
        $region62: #{tpu_custom_call.1} parent=59 // pred_check_branch
          %369 = sbr.rel (%p367) target = $region64
        $region63: #{tpu_custom_call.1} parent=59 // pred_region
          %p370 = scmp.lt.s32.totalorder %s22, 1
          %s371 = scalar_select %p370, %s22, 1
          %s372 = smul.addr %s371, 8
          %s373 = scalar_lea.vmem %s0, %s372
        $region64: #{tpu_custom_call.1} parent=59 // pred_fallthru
          _
      $region60: #{tpu_custom_call.1} parent=5 // pred_fallthru
        _
      %p374 = scmp.le.s32.totalorder 1, %s22
      %p375 = scmp.lt.s32.totalorder %s22, 3
      %p376 = pnand %p374, %p375
      %p377 = pneg %p376
      // Predicated region
      $region65: #{tpu_custom_call.1} parent=5 // pred_check
        _
      $region66: #{tpu_custom_call.1} parent=5 // pred_check_branch
        %379 = sbr.rel (%p376) target = $region68
      $region67: #{tpu_custom_call.1} parent=5 // pred_region
        %s380 = ssub.s32 %s22, 1
        // Predicated region
        $region69: #{tpu_custom_call.1} parent=67 // pred_check
          %p381 = pneg %p216
        $region70: #{tpu_custom_call.1} parent=67 // pred_check_branch
          %383 = sbr.rel (%p381) target = $region72
        $region71: #{tpu_custom_call.1} parent=67 // pred_region
          %384 = dma.done [#allocation3], 256
        $region72: #{tpu_custom_call.1} parent=67 // pred_fallthru
          _
        %p385 = scmp.lt.s32.totalorder %s27, 1
        %s386 = scalar_select %p385, %s27, 1
        %s387 = smul.addr %s386, 8
        %s388 = scalar_lea.vmem %s0, %s387
        %p389 = pneg %p48
        %p390 = pneg %p45
        %p391 = pneg %p69
        %p392 = pneg %p66
        %p393 = pneg %p90
        %p394 = pneg %p87
        %p395 = pneg %p111
        %p396 = pneg %p108
        %p397 = pneg %p132
        %p398 = pneg %p129
        %p399 = pneg %p153
        %p400 = pneg %p150
        %p401 = pneg %p174
        %p402 = pneg %p171
        %p403 = pneg %p195
        %p404 = pneg %p192
        %p405 = pneg %p216
        %p406 = pneg %p213
        %p407 = pneg %p237
        %p408 = pneg %p234
        %p409 = pneg %p258
        %p410 = pneg %p255
        %p411 = pneg %p279
        %p412 = pneg %p276
        %p413 = pneg %p305
        %p414 = pneg %p302
        %s415 = sand.u32 %s292, 1
        %s416 = scalar_lea.sflag [#allocation4], %s415
        %s417 = sand.u32 %s292, 1
        %s418 = smul.addr %s417, 8
        %s419 = scalar_lea.vmem [#allocation5], %s418
        %p420 = scmp.lt.s32.totalorder %s27, 1
        %s421 = scalar_select %p420, %s27, 1
        %s422 = smul.addr %s421, 8
        %s423 = scalar_lea.vmem %s0, %s422
        %v425 = vld [vmem:[%s423] sm:$0xff]
        %v426 = vld [vmem:[%s1] sm:$0x1]
        %v427 = vld [vmem:[%s2] sm:$0x1]
        %vm428 = vcmask 261120
        %v429 = vsel %vm428, %v425, 0.0
        %430 = vadd.xlane.f32.xlu0 %v429
        %v431 = vpop.xlane.xlu0 %430
        %v432 = vrcp.pop 32.0
        %v433 = vmul.f32 %v431, %v432
        %v434 = vsub.f32 %v425, %v433
        %v435 = vmul.f32 %v434, %v434
        %v436 = vsel %vm428, %v435, 0.0
        %437 = vadd.xlane.f32.xlu0 %v436
        %v438 = vpop.xlane.xlu0 %437
        %v439 = vmul.f32 %v438, %v432
        %v440 = vadd.f32 %v439, 1e-05
        %v441 = vrsqrt.pop %v440
        %v442 = vmul.f32 %v434, %v441
        %v444 = vlaneseq
        %v445 = vshrl.u32 %v444, 7
        %v446 = vsub.s32 0, %v445
        %v447 = vrot.slane %v426, %v446
        %v449 = vmul.f32 %v442, %v447
        %v451 = vlaneseq
        %v452 = vshrl.u32 %v451, 7
        %v453 = vsub.s32 0, %v452
        %v454 = vrot.slane %v427, %v453
        %v456 = vadd.f32 %v449, %v454
        %v457 = vpack.c.bf16 %v456, %v456
        %v458 = vld [vmem:[%s3] sm:$0xf]
        %v459 = vld [vmem:[%s3 + $0x4] sm:$0xf]
        %v460 = vld [vmem:[%s3 + $0x8] sm:$0xf]
        %v461 = vld [vmem:[%s3 + $0xc] sm:$0xf]
        %v466 = vunpack.c.l.b16 %v458
        %v467 = vunpack.c.l.b16 %v459
        %v468 = vunpack.c.l.b16 %v460
        %v469 = vunpack.c.l.b16 %v461
        %v470 = vpack.c.b16 %v467, %v466
        %v471 = vpack.c.b16 %v469, %v468
        %v475 = vsel %vm428, %v457, 0
        %477 = vmatprep.subr.bf16.mxu0 0
        %478 = vmatpush1.bf16.msra.mxu0 %v470
        %479 = vmatprep.subr.bf16.mxu0 0
        %480 = vmatpush1.bf16.msra.mxu0 %v471
        %481 = vmatprep.subr.bf16.mxu0 0
        %482 = vmatpush1.bf16.msra.mxu0 0
        %483 = vmatprep.subr.bf16.mxu0 0
        %484 = vmatpush1.bf16.msra.mxu0 0
        %485 = vmatprep.subr.bf16.mxu0 0
        %486 = vmatpush1.bf16.msra.mxu0 0
        %487 = vmatprep.subr.bf16.mxu0 0
        %488 = vmatpush1.bf16.msra.mxu0 0
        %489 = vmatprep.subr.bf16.mxu0 0
        %490 = vmatpush1.bf16.msra.mxu0 0
        %491 = vmatprep.subr.bf16.mxu0 0
        %492 = vmatpush1.bf16.msra.mxu0 0
        %493 = vmatprep.subr.bf16.mxu0 0
        %494 = vmatpush1.bf16.msra.mxu0 0
        %495 = vmatprep.subr.bf16.mxu0 0
        %496 = vmatpush1.bf16.msra.mxu0 0
        %497 = vmatprep.subr.bf16.mxu0 0
        %498 = vmatpush1.bf16.msra.mxu0 0
        %499 = vmatprep.subr.bf16.mxu0 0
        %500 = vmatpush1.bf16.msra.mxu0 0
        %501 = vmatprep.subr.bf16.mxu0 0
        %502 = vmatpush1.bf16.msra.mxu0 0
        %503 = vmatprep.subr.bf16.mxu0 0
        %504 = vmatpush1.bf16.msra.mxu0 0
        %505 = vmatprep.subr.bf16.mxu0 0
        %506 = vmatpush1.bf16.msra.mxu0 0
        %507 = vmatprep.subr.bf16.mxu0 0
        %508 = vmatpush1.bf16.msra.mxu0 0
        %509 = vmatprep.mubr.bf16.mxu0 0
        %510 = vmatmul.mubr.bf16.gmra.mrb[0].mxu0 %v475
        %v511 = vpop.f32.mrb[0].mxu0
        %v512 = vadd.f32 0.0, %v511
        %v513 = vpop.f32.mrb[0].mxu0
        %v514 = vpop.f32.mrb[0].mxu0
        %v515 = vpop.f32.mrb[0].mxu0
        %516 = vdwg.mxu0
        %v517 = vpack.c.bf16 %v512, %v512
        %519 = vrot.lane.b32.xlu0 %v517, 96
        %v520 = vpop.permute.xlu0 %519
        %vm521 = vcmask 64512
        %v523 = vsel %vm521, %v517, 0
        %v526 = vsel %vm521, %v520, 0
        %528 = vmatprep.subr.bf16.mxu0 0
        %529 = vmatpush1.bf16.xpose.msra.mxu0 %v526
        %530 = vmatprep.subr.bf16.mxu0 0
        %531 = vmatpush1.bf16.xpose.msra.mxu0 0
        %532 = vmatprep.subr.bf16.mxu0 0
        %533 = vmatpush1.bf16.xpose.msra.mxu0 0
        %534 = vmatprep.subr.bf16.mxu0 0
        %535 = vmatpush1.bf16.xpose.msra.mxu0 0
        %536 = vmatprep.subr.bf16.mxu0 0
        %537 = vmatpush1.bf16.xpose.msra.mxu0 0
        %538 = vmatprep.subr.bf16.mxu0 0
        %539 = vmatpush1.bf16.xpose.msra.mxu0 0
        %540 = vmatprep.subr.bf16.mxu0 0
        %541 = vmatpush1.bf16.xpose.msra.mxu0 0
        %542 = vmatprep.subr.bf16.mxu0 0
        %543 = vmatpush1.bf16.xpose.msra.mxu0 0
        %544 = vmatprep.subr.bf16.mxu0 0
        %545 = vmatpush1.bf16.xpose.msra.mxu0 0
        %546 = vmatprep.subr.bf16.mxu0 0
        %547 = vmatpush1.bf16.xpose.msra.mxu0 0
        %548 = vmatprep.subr.bf16.mxu0 0
        %549 = vmatpush1.bf16.xpose.msra.mxu0 0
        %550 = vmatprep.subr.bf16.mxu0 0
        %551 = vmatpush1.bf16.xpose.msra.mxu0 0
        %552 = vmatprep.subr.bf16.mxu0 0
        %553 = vmatpush1.bf16.xpose.msra.mxu0 0
        %554 = vmatprep.subr.bf16.mxu0 0
        %555 = vmatpush1.bf16.xpose.msra.mxu0 0
        %556 = vmatprep.subr.bf16.mxu0 0
        %557 = vmatpush1.bf16.xpose.msra.mxu0 0
        %558 = vmatprep.subr.bf16.mxu0 0
        %559 = vmatpush1.bf16.xpose.msra.mxu0 0
        %560 = vmatprep.mubr.bf16.mxu0 0
        %561 = vmatmul.mubr.bf16.gmra.mrb[0].mxu0 %v523
        %v562 = vpop.f32.mrb[0].mxu0
        %v563 = vadd.f32 0.0, %v562
        %v564 = vpop.f32.mrb[0].mxu0
        %v565 = vpop.f32.mrb[0].mxu0
        %v566 = vpop.f32.mrb[0].mxu0
        %567 = vdwg.mxu0
        %v568 = vsel %vm521, %v563, -inf
        %569 = vmax.xlane.f32.xlu0 %v568
        %v570 = vpop.xlane.xlu0 %569
        %v571 = vsub.f32 %v563, %v570
        %v572 = vmul.f32 %v571, 1.442695
        %v573 = vpow.pop %v572
        %v574 = vsel %vm521, %v573, 0.0
        %575 = vadd.xlane.f32.xlu0 %v574
        %v576 = vpop.xlane.xlu0 %575
        %v577 = vrcp.pop %v576
        %v578 = vmul.f32 %v573, %v577
        %v579 = vpack.c.bf16 %v578, %v578
        %580 = vrot.lane.b32.xlu0 %v517, 64
        %v581 = vpop.permute.xlu0 %580
        %v583 = vsel %vm521, %v579, 0
        %vm585 = vcmask 1043456
        %v587 = vsel %vm585, %v581, 0
        %589 = vmatprep.subr.bf16.mxu0 0
        %590 = vmatpush1.bf16.msra.mxu0 %v587
        %591 = vmatprep.subr.bf16.mxu0 0
        %592 = vmatpush1.bf16.msra.mxu0 0
        %593 = vmatprep.subr.bf16.mxu0 0
        %594 = vmatpush1.bf16.msra.mxu0 0
        %595 = vmatprep.subr.bf16.mxu0 0
        %596 = vmatpush1.bf16.msra.mxu0 0
        %597 = vmatprep.subr.bf16.mxu0 0
        %598 = vmatpush1.bf16.msra.mxu0 0
        %599 = vmatprep.subr.bf16.mxu0 0
        %600 = vmatpush1.bf16.msra.mxu0 0
        %601 = vmatprep.subr.bf16.mxu0 0
        %602 = vmatpush1.bf16.msra.mxu0 0
        %603 = vmatprep.subr.bf16.mxu0 0
        %604 = vmatpush1.bf16.msra.mxu0 0
        %605 = vmatprep.subr.bf16.mxu0 0
        %606 = vmatpush1.bf16.msra.mxu0 0
        %607 = vmatprep.subr.bf16.mxu0 0
        %608 = vmatpush1.bf16.msra.mxu0 0
        %609 = vmatprep.subr.bf16.mxu0 0
        %610 = vmatpush1.bf16.msra.mxu0 0
        %611 = vmatprep.subr.bf16.mxu0 0
        %612 = vmatpush1.bf16.msra.mxu0 0
        %613 = vmatprep.subr.bf16.mxu0 0
        %614 = vmatpush1.bf16.msra.mxu0 0
        %615 = vmatprep.subr.bf16.mxu0 0
        %616 = vmatpush1.bf16.msra.mxu0 0
        %617 = vmatprep.subr.bf16.mxu0 0
        %618 = vmatpush1.bf16.msra.mxu0 0
        %619 = vmatprep.subr.bf16.mxu0 0
        %620 = vmatpush1.bf16.msra.mxu0 0
        %621 = vmatprep.mubr.bf16.mxu0 0
        %622 = vmatmul.mubr.bf16.gmra.mrb[0].mxu0 %v583
        %v623 = vpop.f32.mrb[0].mxu0
        %v624 = vadd.f32 0.0, %v623
        %v625 = vpop.f32.mrb[0].mxu0
        %v626 = vpop.f32.mrb[0].mxu0
        %v627 = vpop.f32.mrb[0].mxu0
        %628 = vdwg.mxu0
        %629 = vrot.lane.b32.xlu0 %v517, 120
        %v630 = vpop.permute.xlu0 %629
        %631 = vrot.lane.b32.xlu0 %v517, 88
        %v632 = vpop.permute.xlu0 %631
        %v634 = vsel %vm521, %v630, 0
        %v637 = vsel %vm521, %v632, 0
        %639 = vmatprep.subr.bf16.mxu0 0
        %640 = vmatpush1.bf16.xpose.msra.mxu0 %v637
        %641 = vmatprep.subr.bf16.mxu0 0
        %642 = vmatpush1.bf16.xpose.msra.mxu0 0
        %643 = vmatprep.subr.bf16.mxu0 0
        %644 = vmatpush1.bf16.xpose.msra.mxu0 0
        %645 = vmatprep.subr.bf16.mxu0 0
        %646 = vmatpush1.bf16.xpose.msra.mxu0 0
        %647 = vmatprep.subr.bf16.mxu0 0
        %648 = vmatpush1.bf16.xpose.msra.mxu0 0
        %649 = vmatprep.subr.bf16.mxu0 0
        %650 = vmatpush1.bf16.xpose.msra.mxu0 0
        %651 = vmatprep.subr.bf16.mxu0 0
        %652 = vmatpush1.bf16.xpose.msra.mxu0 0
        %653 = vmatprep.subr.bf16.mxu0 0
        %654 = vmatpush1.bf16.xpose.msra.mxu0 0
        %655 = vmatprep.subr.bf16.mxu0 0
        %656 = vmatpush1.bf16.xpose.msra.mxu0 0
        %657 = vmatprep.subr.bf16.mxu0 0
        %658 = vmatpush1.bf16.xpose.msra.mxu0 0
        %659 = vmatprep.subr.bf16.mxu0 0
        %660 = vmatpush1.bf16.xpose.msra.mxu0 0
        %661 = vmatprep.subr.bf16.mxu0 0
        %662 = vmatpush1.bf16.xpose.msra.mxu0 0
        %663 = vmatprep.subr.bf16.mxu0 0
        %664 = vmatpush1.bf16.xpose.msra.mxu0 0
        %665 = vmatprep.subr.bf16.mxu0 0
        %666 = vmatpush1.bf16.xpose.msra.mxu0 0
        %667 = vmatprep.subr.bf16.mxu0 0
        %668 = vmatpush1.bf16.xpose.msra.mxu0 0
        %669 = vmatprep.subr.bf16.mxu0 0
        %670 = vmatpush1.bf16.xpose.msra.mxu0 0
        %671 = vmatprep.mubr.bf16.mxu0 0
        %672 = vmatmul.mubr.bf16.gmra.mrb[0].mxu0 %v634
        %v673 = vpop.f32.mrb[0].mxu0
        %v674 = vadd.f32 0.0, %v673
        %v675 = vpop.f32.mrb[0].mxu0
        %v676 = vpop.f32.mrb[0].mxu0
        %v677 = vpop.f32.mrb[0].mxu0
        %678 = vdwg.mxu0
        %v679 = vsel %vm521, %v674, -inf
        %680 = vmax.xlane.f32.xlu0 %v679
        %v681 = vpop.xlane.xlu0 %680
        %v682 = vsub.f32 %v674, %v681
        %v683 = vmul.f32 %v682, 1.442695
        %v684 = vpow.pop %v683
        %v685 = vsel %vm521, %v684, 0.0
        %686 = vadd.xlane.f32.xlu0 %v685
        %v687 = vpop.xlane.xlu0 %686
        %v688 = vrcp.pop %v687
        %v689 = vmul.f32 %v684, %v688
        %v690 = vpack.c.bf16 %v689, %v689
        %691 = vrot.lane.b32.xlu0 %v517, 56
        %v692 = vpop.permute.xlu0 %691
        %v694 = vsel %vm521, %v690, 0
        %v697 = vsel %vm585, %v692, 0
        %699 = vmatprep.subr.bf16.mxu0 0
        %700 = vmatpush1.bf16.msra.mxu0 %v697
        %701 = vmatprep.subr.bf16.mxu0 0
        %702 = vmatpush1.bf16.msra.mxu0 0
        %703 = vmatprep.subr.bf16.mxu0 0
        %704 = vmatpush1.bf16.msra.mxu0 0
        %705 = vmatprep.subr.bf16.mxu0 0
        %706 = vmatpush1.bf16.msra.mxu0 0
        %707 = vmatprep.subr.bf16.mxu0 0
        %708 = vmatpush1.bf16.msra.mxu0 0
        %709 = vmatprep.subr.bf16.mxu0 0
        %710 = vmatpush1.bf16.msra.mxu0 0
        %711 = vmatprep.subr.bf16.mxu0 0
        %712 = vmatpush1.bf16.msra.mxu0 0
        %713 = vmatprep.subr.bf16.mxu0 0
        %714 = vmatpush1.bf16.msra.mxu0 0
        %715 = vmatprep.subr.bf16.mxu0 0
        %716 = vmatpush1.bf16.msra.mxu0 0
        %717 = vmatprep.subr.bf16.mxu0 0
        %718 = vmatpush1.bf16.msra.mxu0 0
        %719 = vmatprep.subr.bf16.mxu0 0
        %720 = vmatpush1.bf16.msra.mxu0 0
        %721 = vmatprep.subr.bf16.mxu0 0
        %722 = vmatpush1.bf16.msra.mxu0 0
        %723 = vmatprep.subr.bf16.mxu0 0
        %724 = vmatpush1.bf16.msra.mxu0 0
        %725 = vmatprep.subr.bf16.mxu0 0
        %726 = vmatpush1.bf16.msra.mxu0 0
        %727 = vmatprep.subr.bf16.mxu0 0
        %728 = vmatpush1.bf16.msra.mxu0 0
        %729 = vmatprep.subr.bf16.mxu0 0
        %730 = vmatpush1.bf16.msra.mxu0 0
        %731 = vmatprep.mubr.bf16.mxu0 0
        %732 = vmatmul.mubr.bf16.gmra.mrb[0].mxu0 %v694
        %v733 = vpop.f32.mrb[0].mxu0
        %v734 = vadd.f32 0.0, %v733
        %v735 = vpop.f32.mrb[0].mxu0
        %v736 = vpop.f32.mrb[0].mxu0
        %v737 = vpop.f32.mrb[0].mxu0
        %738 = vdwg.mxu0
        %739 = vrot.lane.b32.xlu0 %v517, 112
        %v740 = vpop.permute.xlu0 %739
        %741 = vrot.lane.b32.xlu0 %v517, 80
        %v742 = vpop.permute.xlu0 %741
        %v744 = vsel %vm521, %v740, 0
        %v747 = vsel %vm521, %v742, 0
        %749 = vmatprep.subr.bf16.mxu0 0
        %750 = vmatpush1.bf16.xpose.msra.mxu0 %v747
        %751 = vmatprep.subr.bf16.mxu0 0
        %752 = vmatpush1.bf16.xpose.msra.mxu0 0
        %753 = vmatprep.subr.bf16.mxu0 0
        %754 = vmatpush1.bf16.xpose.msra.mxu0 0
        %755 = vmatprep.subr.bf16.mxu0 0
        %756 = vmatpush1.bf16.xpose.msra.mxu0 0
        %757 = vmatprep.subr.bf16.mxu0 0
        %758 = vmatpush1.bf16.xpose.msra.mxu0 0
        %759 = vmatprep.subr.bf16.mxu0 0
        %760 = vmatpush1.bf16.xpose.msra.mxu0 0
        %761 = vmatprep.subr.bf16.mxu0 0
        %762 = vmatpush1.bf16.xpose.msra.mxu0 0
        %763 = vmatprep.subr.bf16.mxu0 0
        %764 = vmatpush1.bf16.xpose.msra.mxu0 0
        %765 = vmatprep.subr.bf16.mxu0 0
        %766 = vmatpush1.bf16.xpose.msra.mxu0 0
        %767 = vmatprep.subr.bf16.mxu0 0
        %768 = vmatpush1.bf16.xpose.msra.mxu0 0
        %769 = vmatprep.subr.bf16.mxu0 0
        %770 = vmatpush1.bf16.xpose.msra.mxu0 0
        %771 = vmatprep.subr.bf16.mxu0 0
        %772 = vmatpush1.bf16.xpose.msra.mxu0 0
        %773 = vmatprep.subr.bf16.mxu0 0
        %774 = vmatpush1.bf16.xpose.msra.mxu0 0
        %775 = vmatprep.subr.bf16.mxu0 0
        %776 = vmatpush1.bf16.xpose.msra.mxu0 0
        %777 = vmatprep.subr.bf16.mxu0 0
        %778 = vmatpush1.bf16.xpose.msra.mxu0 0
        %779 = vmatprep.subr.bf16.mxu0 0
        %780 = vmatpush1.bf16.xpose.msra.mxu0 0
        %781 = vmatprep.mubr.bf16.mxu0 0
        %782 = vmatmul.mubr.bf16.gmra.mrb[0].mxu0 %v744
        %v783 = vpop.f32.mrb[0].mxu0
        %v784 = vadd.f32 0.0, %v783
        %v785 = vpop.f32.mrb[0].mxu0
        %v786 = vpop.f32.mrb[0].mxu0
        %v787 = vpop.f32.mrb[0].mxu0
        %788 = vdwg.mxu0
        %v789 = vsel %vm521, %v784, -inf
        %790 = vmax.xlane.f32.xlu0 %v789
        %v791 = vpop.xlane.xlu0 %790
        %v792 = vsub.f32 %v784, %v791
        %v793 = vmul.f32 %v792, 1.442695
        %v794 = vpow.pop %v793
        %v795 = vsel %vm521, %v794, 0.0
        %796 = vadd.xlane.f32.xlu0 %v795
        %v797 = vpop.xlane.xlu0 %796
        %v798 = vrcp.pop %v797
        %v799 = vmul.f32 %v794, %v798
        %v800 = vpack.c.bf16 %v799, %v799
        %801 = vrot.lane.b32.xlu0 %v517, 48
        %v802 = vpop.permute.xlu0 %801
        %v804 = vsel %vm521, %v800, 0
        %v807 = vsel %vm585, %v802, 0
        %809 = vmatprep.subr.bf16.mxu0 0
        %810 = vmatpush1.bf16.msra.mxu0 %v807
        %811 = vmatprep.subr.bf16.mxu0 0
        %812 = vmatpush1.bf16.msra.mxu0 0
        %813 = vmatprep.subr.bf16.mxu0 0
        %814 = vmatpush1.bf16.msra.mxu0 0
        %815 = vmatprep.subr.bf16.mxu0 0
        %816 = vmatpush1.bf16.msra.mxu0 0
        %817 = vmatprep.subr.bf16.mxu0 0
        %818 = vmatpush1.bf16.msra.mxu0 0
        %819 = vmatprep.subr.bf16.mxu0 0
        %820 = vmatpush1.bf16.msra.mxu0 0
        %821 = vmatprep.subr.bf16.mxu0 0
        %822 = vmatpush1.bf16.msra.mxu0 0
        %823 = vmatprep.subr.bf16.mxu0 0
        %824 = vmatpush1.bf16.msra.mxu0 0
        %825 = vmatprep.subr.bf16.mxu0 0
        %826 = vmatpush1.bf16.msra.mxu0 0
        %827 = vmatprep.subr.bf16.mxu0 0
        %828 = vmatpush1.bf16.msra.mxu0 0
        %829 = vmatprep.subr.bf16.mxu0 0
        %830 = vmatpush1.bf16.msra.mxu0 0
        %831 = vmatprep.subr.bf16.mxu0 0
        %832 = vmatpush1.bf16.msra.mxu0 0
        %833 = vmatprep.subr.bf16.mxu0 0
        %834 = vmatpush1.bf16.msra.mxu0 0
        %835 = vmatprep.subr.bf16.mxu0 0
        %836 = vmatpush1.bf16.msra.mxu0 0
        %837 = vmatprep.subr.bf16.mxu0 0
        %838 = vmatpush1.bf16.msra.mxu0 0
        %839 = vmatprep.subr.bf16.mxu0 0
        %840 = vmatpush1.bf16.msra.mxu0 0
        %841 = vmatprep.mubr.bf16.mxu0 0
        %842 = vmatmul.mubr.bf16.gmra.mrb[0].mxu0 %v804
        %v843 = vpop.f32.mrb[0].mxu0
        %v844 = vadd.f32 0.0, %v843
        %v845 = vpop.f32.mrb[0].mxu0
        %v846 = vpop.f32.mrb[0].mxu0
        %v847 = vpop.f32.mrb[0].mxu0
        %848 = vdwg.mxu0
        %849 = vrot.lane.b32.xlu0 %v517, 104
        %v850 = vpop.permute.xlu0 %849
        %851 = vrot.lane.b32.xlu0 %v517, 72
        %v852 = vpop.permute.xlu0 %851
        %v854 = vsel %vm521, %v850, 0
        %v857 = vsel %vm521, %v852, 0
        %859 = vmatprep.subr.bf16.mxu0 0
        %860 = vmatpush1.bf16.xpose.msra.mxu0 %v857
        %861 = vmatprep.subr.bf16.mxu0 0
        %862 = vmatpush1.bf16.xpose.msra.mxu0 0
        %863 = vmatprep.subr.bf16.mxu0 0
        %864 = vmatpush1.bf16.xpose.msra.mxu0 0
        %865 = vmatprep.subr.bf16.mxu0 0
        %866 = vmatpush1.bf16.xpose.msra.mxu0 0
        %867 = vmatprep.subr.bf16.mxu0 0
        %868 = vmatpush1.bf16.xpose.msra.mxu0 0
        %869 = vmatprep.subr.bf16.mxu0 0
        %870 = vmatpush1.bf16.xpose.msra.mxu0 0
        %871 = vmatprep.subr.bf16.mxu0 0
        %872 = vmatpush1.bf16.xpose.msra.mxu0 0
        %873 = vmatprep.subr.bf16.mxu0 0
        %874 = vmatpush1.bf16.xpose.msra.mxu0 0
        %875 = vmatprep.subr.bf16.mxu0 0
        %876 = vmatpush1.bf16.xpose.msra.mxu0 0
        %877 = vmatprep.subr.bf16.mxu0 0
        %878 = vmatpush1.bf16.xpose.msra.mxu0 0
        %879 = vmatprep.subr.bf16.mxu0 0
        %880 = vmatpush1.bf16.xpose.msra.mxu0 0
        %881 = vmatprep.subr.bf16.mxu0 0
        %882 = vmatpush1.bf16.xpose.msra.mxu0 0
        %883 = vmatprep.subr.bf16.mxu0 0
        %884 = vmatpush1.bf16.xpose.msra.mxu0 0
        %885 = vmatprep.subr.bf16.mxu0 0
        %886 = vmatpush1.bf16.xpose.msra.mxu0 0
        %887 = vmatprep.subr.bf16.mxu0 0
        %888 = vmatpush1.bf16.xpose.msra.mxu0 0
        %889 = vmatprep.subr.bf16.mxu0 0
        %890 = vmatpush1.bf16.xpose.msra.mxu0 0
        %891 = vmatprep.mubr.bf16.mxu0 0
        %892 = vmatmul.mubr.bf16.gmra.mrb[0].mxu0 %v854
        %v893 = vpop.f32.mrb[0].mxu0
        %v894 = vadd.f32 0.0, %v893
        %v895 = vpop.f32.mrb[0].mxu0
        %v896 = vpop.f32.mrb[0].mxu0
        %v897 = vpop.f32.mrb[0].mxu0
        %898 = vdwg.mxu0
        %v899 = vsel %vm521, %v894, -inf
        %900 = vmax.xlane.f32.xlu0 %v899
        %v901 = vpop.xlane.xlu0 %900
        %v902 = vsub.f32 %v894, %v901
        %v903 = vmul.f32 %v902, 1.442695
        %v904 = vpow.pop %v903
        %v905 = vsel %vm521, %v904, 0.0
        %906 = vadd.xlane.f32.xlu0 %v905
        %v907 = vpop.xlane.xlu0 %906
        %v908 = vrcp.pop %v907
        %v909 = vmul.f32 %v904, %v908
        %v910 = vpack.c.bf16 %v909, %v909
        %911 = vrot.lane.b32.xlu0 %v517, 40
        %v912 = vpop.permute.xlu0 %911
        %v914 = vsel %vm521, %v910, 0
        %v917 = vsel %vm585, %v912, 0
        %919 = vmatprep.subr.bf16.mxu0 0
        %920 = vmatpush1.bf16.msra.mxu0 %v917
        %921 = vmatprep.subr.bf16.mxu0 0
        %922 = vmatpush1.bf16.msra.mxu0 0
        %923 = vmatprep.subr.bf16.mxu0 0
        %924 = vmatpush1.bf16.msra.mxu0 0
        %925 = vmatprep.subr.bf16.mxu0 0
        %926 = vmatpush1.bf16.msra.mxu0 0
        %927 = vmatprep.subr.bf16.mxu0 0
        %928 = vmatpush1.bf16.msra.mxu0 0
        %929 = vmatprep.subr.bf16.mxu0 0
        %930 = vmatpush1.bf16.msra.mxu0 0
        %931 = vmatprep.subr.bf16.mxu0 0
        %932 = vmatpush1.bf16.msra.mxu0 0
        %933 = vmatprep.subr.bf16.mxu0 0
        %934 = vmatpush1.bf16.msra.mxu0 0
        %935 = vmatprep.subr.bf16.mxu0 0
        %936 = vmatpush1.bf16.msra.mxu0 0
        %937 = vmatprep.subr.bf16.mxu0 0
        %938 = vmatpush1.bf16.msra.mxu0 0
        %939 = vmatprep.subr.bf16.mxu0 0
        %940 = vmatpush1.bf16.msra.mxu0 0
        %941 = vmatprep.subr.bf16.mxu0 0
        %942 = vmatpush1.bf16.msra.mxu0 0
        %943 = vmatprep.subr.bf16.mxu0 0
        %944 = vmatpush1.bf16.msra.mxu0 0
        %945 = vmatprep.subr.bf16.mxu0 0
        %946 = vmatpush1.bf16.msra.mxu0 0
        %947 = vmatprep.subr.bf16.mxu0 0
        %948 = vmatpush1.bf16.msra.mxu0 0
        %949 = vmatprep.subr.bf16.mxu0 0
        %950 = vmatpush1.bf16.msra.mxu0 0
        %951 = vmatprep.mubr.bf16.mxu0 0
        %952 = vmatmul.mubr.bf16.gmra.mrb[0].mxu0 %v914
        %v953 = vpop.f32.mrb[0].mxu0
        %v954 = vadd.f32 0.0, %v953
        %v955 = vpop.f32.mrb[0].mxu0
        %v956 = vpop.f32.mrb[0].mxu0
        %v957 = vpop.f32.mrb[0].mxu0
        %958 = vdwg.mxu0
        %960 = vrot.lane.b32.xlu0 %v734, 8
        %v961 = vpop.permute.xlu0 %960
        %964 = vrot.lane.b32.xlu0 %v844, 16
        %v965 = vpop.permute.xlu0 %964
        %968 = vrot.lane.b32.xlu0 %v954, 24
        %v969 = vpop.permute.xlu0 %968
        %v971 = vsel %vm521, %v624, %v961
        %vm972 = vcmask 130048
        %v973 = vsel %vm972, %v971, %v965
        %vm974 = vcmask 195584
        %v975 = vsel %vm974, %v973, %v969
        %v976 = vpack.c.bf16 %v975, %v975
        %v977 = vld [vmem:[%s4] sm:$0xf]
        %v978 = vld [vmem:[%s4 + $0x4] sm:$0xf]
        %v979 = vld [vmem:[%s4 + $0x8] sm:$0xf]
        %v980 = vld [vmem:[%s4 + $0xc] sm:$0xf]
        %v981 = vld [vmem:[%s5] sm:$0x1]
        %v983 = vlaneseq
        %v984 = vshrl.u32 %v983, 7
        %v985 = vsub.s32 0, %v984
        %v986 = vrot.slane %v981, %v985
        %v992 = vunpack.c.l.b16 %v977
        %v993 = vunpack.c.l.b16 %v978
        %v994 = vunpack.c.l.b16 %v979
        %v995 = vunpack.c.l.b16 %v980
        %v996 = vpack.c.b16 %v993, %v992
        %v997 = vpack.c.b16 %v995, %v994
        %v1001 = vsel %vm428, %v976, 0
        %1003 = vmatprep.subr.bf16.mxu0 0
        %1004 = vmatpush1.bf16.msra.mxu0 %v996
        %1005 = vmatprep.subr.bf16.mxu0 0
        %1006 = vmatpush1.bf16.msra.mxu0 %v997
        %1007 = vmatprep.subr.bf16.mxu0 0
        %1008 = vmatpush1.bf16.msra.mxu0 0
        %1009 = vmatprep.subr.bf16.mxu0 0
        %1010 = vmatpush1.bf16.msra.mxu0 0
        %1011 = vmatprep.subr.bf16.mxu0 0
        %1012 = vmatpush1.bf16.msra.mxu0 0
        %1013 = vmatprep.subr.bf16.mxu0 0
        %1014 = vmatpush1.bf16.msra.mxu0 0
        %1015 = vmatprep.subr.bf16.mxu0 0
        %1016 = vmatpush1.bf16.msra.mxu0 0
        %1017 = vmatprep.subr.bf16.mxu0 0
        %1018 = vmatpush1.bf16.msra.mxu0 0
        %1019 = vmatprep.subr.bf16.mxu0 0
        %1020 = vmatpush1.bf16.msra.mxu0 0
        %1021 = vmatprep.subr.bf16.mxu0 0
        %1022 = vmatpush1.bf16.msra.mxu0 0
        %1023 = vmatprep.subr.bf16.mxu0 0
        %1024 = vmatpush1.bf16.msra.mxu0 0
        %1025 = vmatprep.subr.bf16.mxu0 0
        %1026 = vmatpush1.bf16.msra.mxu0 0
        %1027 = vmatprep.subr.bf16.mxu0 0
        %1028 = vmatpush1.bf16.msra.mxu0 0
        %1029 = vmatprep.subr.bf16.mxu0 0
        %1030 = vmatpush1.bf16.msra.mxu0 0
        %1031 = vmatprep.subr.bf16.mxu0 0
        %1032 = vmatpush1.bf16.msra.mxu0 0
        %1033 = vmatprep.subr.bf16.mxu0 0
        %1034 = vmatpush1.bf16.msra.mxu0 0
        %1035 = vmatprep.mubr.bf16.mxu0 0
        %1036 = vmatmul.mubr.bf16.gmra.mrb[0].mxu0 %v1001
        %v1037 = vpop.f32.mrb[0].mxu0
        %v1038 = vadd.f32 %v986, %v1037
        %v1039 = vpop.f32.mrb[0].mxu0
        %v1040 = vpop.f32.mrb[0].mxu0
        %v1041 = vpop.f32.mrb[0].mxu0
        %1042 = vdwg.mxu0
        %v1043 = vadd.f32 %v425, %v1038
        %v1044 = vld [vmem:[%s6] sm:$0x1]
        %v1045 = vld [vmem:[%s7] sm:$0x1]
        %v1046 = vsel %vm428, %v1043, 0.0
        %1047 = vadd.xlane.f32.xlu0 %v1046
        %v1048 = vpop.xlane.xlu0 %1047
        %v1049 = vmul.f32 %v1048, %v432
        %v1050 = vsub.f32 %v1043, %v1049
        %v1051 = vmul.f32 %v1050, %v1050
        %v1052 = vsel %vm428, %v1051, 0.0
        %1053 = vadd.xlane.f32.xlu0 %v1052
        %v1054 = vpop.xlane.xlu0 %1053
        %v1055 = vmul.f32 %v1054, %v432
        %v1056 = vadd.f32 %v1055, 1e-05
        %v1057 = vrsqrt.pop %v1056
        %v1058 = vmul.f32 %v1050, %v1057
        %v1060 = vlaneseq
        %v1061 = vshrl.u32 %v1060, 7
        %v1062 = vsub.s32 0, %v1061
        %v1063 = vrot.slane %v1044, %v1062
        %v1065 = vmul.f32 %v1058, %v1063
        %v1067 = vlaneseq
        %v1068 = vshrl.u32 %v1067, 7
        %v1069 = vsub.s32 0, %v1068
        %v1070 = vrot.slane %v1045, %v1069
        %v1072 = vadd.f32 %v1065, %v1070
        %v1073 = vpack.c.bf16 %v1072, %v1072
        %v1074 = vld [vmem:[#allocation2] sm:$0xf]
        %v1075 = vld [vmem:[#allocation2 + $0x4] sm:$0xf]
        %v1076 = vld [vmem:[#allocation2 + $0x8] sm:$0xf]
        %v1077 = vld [vmem:[#allocation2 + $0xc] sm:$0xf]
        %v1078 = vld [vmem:[%s9] sm:$0x1]
        %v1080 = vlaneseq
        %v1081 = vshrl.u32 %v1080, 7
        %v1082 = vsub.s32 0, %v1081
        %v1083 = vrot.slane %v1078, %v1082
        %v1089 = vunpack.c.l.b16 %v1074
        %v1090 = vunpack.c.l.b16 %v1075
        %v1091 = vunpack.c.l.b16 %v1076
        %v1092 = vunpack.c.l.b16 %v1077
        %v1093 = vpack.c.b16 %v1090, %v1089
        %v1094 = vpack.c.b16 %v1092, %v1091
        %v1098 = vsel %vm428, %v1073, 0
        %1100 = vmatprep.subr.bf16.mxu0 0
        %1101 = vmatpush1.bf16.msra.mxu0 %v1093
        %1102 = vmatprep.subr.bf16.mxu0 0
        %1103 = vmatpush1.bf16.msra.mxu0 %v1094
        %1104 = vmatprep.subr.bf16.mxu0 0
        %1105 = vmatpush1.bf16.msra.mxu0 0
        %1106 = vmatprep.subr.bf16.mxu0 0
        %1107 = vmatpush1.bf16.msra.mxu0 0
        %1108 = vmatprep.subr.bf16.mxu0 0
        %1109 = vmatpush1.bf16.msra.mxu0 0
        %1110 = vmatprep.subr.bf16.mxu0 0
        %1111 = vmatpush1.bf16.msra.mxu0 0
        %1112 = vmatprep.subr.bf16.mxu0 0
        %1113 = vmatpush1.bf16.msra.mxu0 0
        %1114 = vmatprep.subr.bf16.mxu0 0
        %1115 = vmatpush1.bf16.msra.mxu0 0
        %1116 = vmatprep.subr.bf16.mxu0 0
        %1117 = vmatpush1.bf16.msra.mxu0 0
        %1118 = vmatprep.subr.bf16.mxu0 0
        %1119 = vmatpush1.bf16.msra.mxu0 0
        %1120 = vmatprep.subr.bf16.mxu0 0
        %1121 = vmatpush1.bf16.msra.mxu0 0
        %1122 = vmatprep.subr.bf16.mxu0 0
        %1123 = vmatpush1.bf16.msra.mxu0 0
        %1124 = vmatprep.subr.bf16.mxu0 0
        %1125 = vmatpush1.bf16.msra.mxu0 0
        %1126 = vmatprep.subr.bf16.mxu0 0
        %1127 = vmatpush1.bf16.msra.mxu0 0
        %1128 = vmatprep.subr.bf16.mxu0 0
        %1129 = vmatpush1.bf16.msra.mxu0 0
        %1130 = vmatprep.subr.bf16.mxu0 0
        %1131 = vmatpush1.bf16.msra.mxu0 0
        %1132 = vmatprep.mubr.bf16.mxu0 0
        %1133 = vmatmul.mubr.bf16.gmra.mrb[0].mxu0 %v1098
        %v1134 = vpop.f32.mrb[0].mxu0
        %v1135 = vadd.f32 %v1083, %v1134
        %v1136 = vpop.f32.mrb[0].mxu0
        %v1137 = vpop.f32.mrb[0].mxu0
        %v1138 = vpop.f32.mrb[0].mxu0
        %1139 = vdwg.mxu0
        %v1140 = vmax.f32 %v1135, 0.0
        %v1141 = vpack.c.bf16 %v1140, %v1140
        %v1142 = vld [vmem:[%s10] sm:$0xf]
        %v1143 = vld [vmem:[%s10 + $0x4] sm:$0xf]
        %v1144 = vld [vmem:[%s10 + $0x8] sm:$0xf]
        %v1145 = vld [vmem:[%s10 + $0xc] sm:$0xf]
        %v1146 = vld [vmem:[%s10 + $0x10] sm:$0xf]
        %v1147 = vld [vmem:[%s10 + $0x14] sm:$0xf]
        %v1148 = vld [vmem:[%s10 + $0x18] sm:$0xf]
        %v1149 = vld [vmem:[%s10 + $0x1c] sm:$0xf]
        %v1150 = vld [vmem:[%s11] sm:$0x1]
        %v1152 = vlaneseq
        %v1153 = vshrl.u32 %v1152, 7
        %v1154 = vsub.s32 0, %v1153
        %v1155 = vrot.slane %v1150, %v1154
        %v1165 = vunpack.c.l.b16 %v1142
        %v1166 = vunpack.c.l.b16 %v1143
        %v1167 = vunpack.c.l.b16 %v1144
        %v1168 = vunpack.c.l.b16 %v1145
        %v1169 = vunpack.c.l.b16 %v1146
        %v1170 = vunpack.c.l.b16 %v1147
        %v1171 = vunpack.c.l.b16 %v1148
        %v1172 = vunpack.c.l.b16 %v1149
        %v1173 = vpack.c.b16 %v1166, %v1165
        %v1174 = vpack.c.b16 %v1168, %v1167
        %v1175 = vpack.c.b16 %v1170, %v1169
        %v1176 = vpack.c.b16 %v1172, %v1171
        %vm1181 = vcmask 523264
        %v1183 = vsel %vm1181, %v1141, 0
        %1185 = vmatprep.subr.bf16.mxu0 0
        %1186 = vmatpush1.bf16.msra.mxu0 %v1173
        %1187 = vmatprep.subr.bf16.mxu0 0
        %1188 = vmatpush1.bf16.msra.mxu0 %v1174
        %1189 = vmatprep.subr.bf16.mxu0 0
        %1190 = vmatpush1.bf16.msra.mxu0 %v1175
        %1191 = vmatprep.subr.bf16.mxu0 0
        %1192 = vmatpush1.bf16.msra.mxu0 %v1176
        %1193 = vmatprep.subr.bf16.mxu0 0
        %1194 = vmatpush1.bf16.msra.mxu0 0
        %1195 = vmatprep.subr.bf16.mxu0 0
        %1196 = vmatpush1.bf16.msra.mxu0 0
        %1197 = vmatprep.subr.bf16.mxu0 0
        %1198 = vmatpush1.bf16.msra.mxu0 0
        %1199 = vmatprep.subr.bf16.mxu0 0
        %1200 = vmatpush1.bf16.msra.mxu0 0
        %1201 = vmatprep.subr.bf16.mxu0 0
        %1202 = vmatpush1.bf16.msra.mxu0 0
        %1203 = vmatprep.subr.bf16.mxu0 0
        %1204 = vmatpush1.bf16.msra.mxu0 0
        %1205 = vmatprep.subr.bf16.mxu0 0
        %1206 = vmatpush1.bf16.msra.mxu0 0
        %1207 = vmatprep.subr.bf16.mxu0 0
        %1208 = vmatpush1.bf16.msra.mxu0 0
        %1209 = vmatprep.subr.bf16.mxu0 0
        %1210 = vmatpush1.bf16.msra.mxu0 0
        %1211 = vmatprep.subr.bf16.mxu0 0
        %1212 = vmatpush1.bf16.msra.mxu0 0
        %1213 = vmatprep.subr.bf16.mxu0 0
        %1214 = vmatpush1.bf16.msra.mxu0 0
        %1215 = vmatprep.subr.bf16.mxu0 0
        %1216 = vmatpush1.bf16.msra.mxu0 0
        %1217 = vmatprep.mubr.bf16.mxu0 0
        %1218 = vmatmul.mubr.bf16.gmra.mrb[0].mxu0 %v1183
        %v1219 = vpop.f32.mrb[0].mxu0
        %v1220 = vadd.f32 %v1155, %v1219
        %v1221 = vpop.f32.mrb[0].mxu0
        %v1222 = vpop.f32.mrb[0].mxu0
        %v1223 = vpop.f32.mrb[0].mxu0
        %1224 = vdwg.mxu0
        %v1225 = vadd.f32 %v1072, %v1220
        %1226 = vst.msk [vmem:[%s419] sm:$0xff] %vm428, %v1225
        %s1227 = sand.u32 %s292, 1
        %s1228 = scalar_lea.sflag [#allocation4], %s1227
        %s1229 = sand.u32 %s292, 1
        %s1230 = smul.addr %s1229, 8
        %s1231 = scalar_lea.vmem [#allocation5], %s1230
        // Predicated region
        $region73: #{tpu_custom_call.1} parent=67 // pred_check
          %p1232 = pneg %p302
        $region74: #{tpu_custom_call.1} parent=67 // pred_check_branch
          %1234 = sbr.rel (%p1232) target = $region76
        $region75: #{tpu_custom_call.1} parent=67 // pred_region
          %s1236 = ssub.s32 128, 128
          %1237 = vsyncadd %s1228, %s1236
          %s1238 = smul.addr %s27, 128
          %s1239 = scalar_lea.hbm %s12, %s1238
          %s1241 = sshll.u32 %s1231, 4
          %s1242 = int_to_ptr.vmem [resolvable:$true] %s1241
          %1244 = dma.vmem_to_hbm [thread:$0]  %s1242, 128, %s1239, %s1228
        $region76: #{tpu_custom_call.1} parent=67 // pred_fallthru
          _
      $region68: #{tpu_custom_call.1} parent=5 // pred_fallthru
        _
      %p1245 = scmp.le.s32.totalorder 2, %s22
      // Predicated region
      $region77: #{tpu_custom_call.1} parent=5 // pred_check
        %p1246 = pneg %p1245
      $region78: #{tpu_custom_call.1} parent=5 // pred_check_branch
        %1248 = sbr.rel (%p1246) target = $region80
      $region79: #{tpu_custom_call.1} parent=5 // pred_region
        %s1249 = ssub.s32 %s22, 2
        // Predicated region
        $region81: #{tpu_custom_call.1} parent=79 // pred_check
          %p1250 = pneg %p308
        $region82: #{tpu_custom_call.1} parent=79 // pred_check_branch
          %1252 = sbr.rel (%p1250) target = $region84
        $region83: #{tpu_custom_call.1} parent=79 // pred_region
          %s1253 = sand.u32 %s293, 1
          %s1254 = scalar_lea.sflag [#allocation4], %s1253
          %s1255 = sand.u32 %s293, 1
          %s1256 = smul.addr %s1255, 8
          %s1257 = scalar_lea.vmem [#allocation5], %s1256
          %1258 = dma.done %s1254, 128
        $region84: #{tpu_custom_call.1} parent=79 // pred_fallthru
          _
      $region80: #{tpu_custom_call.1} parent=5 // pred_fallthru
        _
    $region6: #{tpu_custom_call.1} parent=1 // loop_footer
      %s26 = sadd.s32 1, %s22
    $region7: #{tpu_custom_call.1} parent=1 // loop_footer_branch
      %21 = sbr.rel target = $region3
    $region8: #{tpu_custom_call.1} parent=1 // loop_exit
      _
    %1259 = vsyncpa [#allocation3], 1
    %s1260 = scalar_lea.sflag [#allocation3], 1
    %1261 = vsyncpa %s1260, 1
    %1262 = vsyncpa [#allocation4], 1
    %s1263 = scalar_lea.sflag [#allocation4], 1
    %1264 = vsyncpa %s1263, 1

</llo_original>
